<compile_context>
chip_gen: v5e
topology: v5e:2x2
jax: 0.10.0
libtpu: 0.0.40
codegen_flags: <defaults>
</compile_context>

<pallas_src>
import functools

import jax
import jax.numpy as jnp
from jax.experimental import pallas as pl
from jax.experimental.pallas import tpu as pltpu


# ----------------------------------------------------------------------------
# Fused Pallas kernel: all GRU layers + linear head in one call.
# ----------------------------------------------------------------------------
def fused_gru_kernel(*refs, num_layers, T, H):
    """Ref layout (in order):
      refs[0]                 : x      (T, Bb, Din)        time-major input block
      refs[1 : 1+4L]          : per layer l:
          w_rzn  (Din_l, 3H)  : fused input->gate weights  (columns r|z|n)
          u_rzn  (H, 3H)      : fused hidden->gate weights (columns r|z|n)
          b_rzn  (1, 3H)      : [b_ir+b_hr | b_iz+b_hz | b_in]   (pre-folded)
          b_hn   (1, H)       : hidden n-gate bias (must stay inside r*(...))
      refs[1+4L], refs[2+4L]  : lin_w (H, O), lin_b (1, O)
      refs[3+4L]              : out   (Bb, O)              output block
      refs[4+4L]              : gx scratch    (T, Bb, 3H)
      refs[5+4L] (if L>1)     : hseq scratch  (T, Bb, H)
    """
    n_w = 4 * num_layers
    x_ref = refs[0]
    layer_refs = refs[1:1 + n_w]
    lin_w_ref = refs[1 + n_w]
    lin_b_ref = refs[2 + n_w]
    out_ref = refs[3 + n_w]
    gx_ref = refs[4 + n_w]
    hseq_ref = refs[5 + n_w] if num_layers > 1 else None

    Bb = x_ref.shape[1]
    f32 = jnp.float32

    h_last = None
    for layer in range(num_layers):
        w_rzn, u_rzn_ref, b_rzn, b_hn_ref = layer_refs[4 * layer:4 * (layer + 1)]

        # ---- Bulk input projection for ALL timesteps: ONE (T*Bb, Din)@(Din, 3H) MXU
        #      matmul per layer, parked in a single lane-dense VMEM scratch (off the
        #      serial critical path, not a live value across the time loop).
        x_tb = x_ref[...] if layer == 0 else hseq_ref[...]          # (T, Bb, Din_l)
        x2d = x_tb.reshape(T * Bb, x_tb.shape[-1])
        gx_ref[...] = (jnp.dot(x2d, w_rzn[...], preferred_element_type=f32)
                       + b_rzn[...]).reshape(T, Bb, 3 * H)

        # Hidden->gate fused weight stays resident across the whole time loop.
        u_rzn = u_rzn_ref[...]                                      # (H, 3H)
        b_hn = b_hn_ref[...]                                        # (1, H)
        last_layer = (layer == num_layers - 1)

        def step(t, h, _last=last_layer, _u=u_rzn, _b_hn=b_hn):
            # ONE fused (Bb,H)@(H,3H) MXU push per step (single result drain), then
            # lane-slice gate math on VPU/EUP; r|z share one sigmoid slab.
            gh = jnp.dot(h, _u, preferred_element_type=f32)         # (Bb, 3H)
            gx = gx_ref[t]                                          # (Bb, 3H)
            rz = jax.nn.sigmoid(gx[:, :2 * H] + gh[:, :2 * H])
            r = rz[:, :H]
            z = rz[:, H:]
            n = jnp.tanh(gx[:, 2 * H:] + r * (gh[:, 2 * H:] + _b_hn))
            h_new = (1.0 - z) * n + z * h
            if not _last:
                hseq_ref[t] = h_new        # feeds the next layer's input projection
            return h_new

        h0 = jnp.zeros((Bb, H), f32)
        # fori_loop bounds live ranges (vs. a static Python unroll); full unroll for
        # short T keeps LLO visibility, partial unroll amortizes loop overhead otherwise.
        h_last = jax.lax.fori_loop(0, T, step, h0,
                                   unroll=True if T <= 32 else 4)
        # TODO(synk): for H >= 128, hold u_rzn in MXU staging regs across the loop via
        # pltpu.matmul_push_rhs / matmul_acc_lhs / matmul_pop to skip per-step RHS loads.

    # ---- Linear head on the final hidden state (kernel epilogue, no HBM roundtrip).
    out_ref[...] = (jnp.dot(h_last, lin_w_ref[...], preferred_element_type=f32)
                    + lin_b_ref[...])


# ----------------------------------------------------------------------------
# Hardware queries (defensive: fall back to conservative defaults).
# ----------------------------------------------------------------------------
def _tpu_vmem_capacity_bytes():
    try:
        cap = getattr(pltpu.get_tpu_info(), "vmem_capacity_bytes", None)
        if cap:
            return int(cap)
    except Exception:
        pass
    return 64 * 1024 * 1024      # conservative (v7x per-TC size)


def _num_tensorcores():
    try:
        info = pltpu.get_tpu_info()
        for name in ("num_cores", "core_count", "num_tensorcores",
                     "tensorcore_count", "cores_per_chip"):
            v = getattr(info, name, None)
            if isinstance(v, int) and v > 0:
                return v
    except Exception:
        pass
    try:
        kind = jax.devices()[0].device_kind.lower()
        if any(tag in kind for tag in ("v4", "v5p", "v7")):
            return 2             # megacore / dual-TensorCore chips
    except Exception:
        pass
    return 1                     # v5e / v6e: single TensorCore


def _pick_batch_block(B, num_cores):
    # Split the batch across grid blocks ONLY when there are multiple TensorCores
    # (grid is a serial loop on single-TC chips) and halves stay 8-sublane aligned.
    if num_cores < 2:
        return B
    blk = B // num_cores
    if blk >= 8 and blk % 8 == 0 and B % blk == 0:
        return blk
    return B


def _full_spec(shape):
    nd = len(shape)
    # TODO(synk): add pipeline_mode=pl.Buffered(1) on these constant-index weight specs
    # when large-H configs need the VMEM (avoids double-buffering constant inputs).
    return pl.BlockSpec(shape, lambda i, _nd=nd: (0,) * _nd)


# ----------------------------------------------------------------------------
# Wrapper
# ----------------------------------------------------------------------------
@functools.partial(jax.jit, static_argnums=(2,))
def gru_forward(x, params, num_layers):
    """x: (B, T, Din) batch-first; PyTorch-layout params. Returns (B, output_size)."""
    B, T, Din = x.shape
    H = params['l0']['w_hh'].shape[1]
    O = params['lin_w'].shape[0]

    # Time-major inside the kernel: per-step accesses become leading-axis indexes.
    # TODO(synk): for production-size B*T*Din, ingest batch-major blocks and relayout
    # once in-kernel (XLU is idle here) to avoid this extra HBM pass over x.
    x_tb = jnp.transpose(x, (1, 0, 2)).astype(jnp.float32)          # (T, B, Din)

    num_cores = _num_tensorcores()
    block_b = _pick_batch_block(B, num_cores)
    grid = (B // block_b,)

    inputs = [x_tb]
    in_specs = [pl.BlockSpec((T, block_b, Din), lambda i: (0, i, 0))]

    for layer in range(num_layers):
        p = params[f'l{layer}']
        w_ih = p['w_ih'].astype(jnp.float32)      # (3H, Din_l), gate order r,z,n
        w_hh = p['w_hh'].astype(jnp.float32)      # (3H, H)
        b_ih = p['b_ih'].astype(jnp.float32)      # (3H,)
        b_hh = p['b_hh'].astype(jnp.float32)      # (3H,)
        layer_inputs = [
            w_ih.T,                                                   # (Din_l, 3H) fused
            w_hh.T,                                                   # (H, 3H)     fused
            jnp.concatenate([b_ih[:2 * H] + b_hh[:2 * H],             # b_r,b_z folded
                             b_ih[2 * H:]]).reshape(1, 3 * H),        # + b_in
            b_hh[2 * H:].reshape(1, H),                               # b_hn separate
        ]
        inputs += layer_inputs
        in_specs += [_full_spec(a.shape) for a in layer_inputs]

    lin_w = params['lin_w'].astype(jnp.float32).T                     # (H, O)
    lin_b = params['lin_b'].astype(jnp.float32).reshape(1, O)
    inputs += [lin_w, lin_b]
    in_specs += [_full_spec(lin_w.shape), _full_spec(lin_b.shape)]

    out_spec = pl.BlockSpec((block_b, O), lambda i: (i, 0))
    scratch = [pltpu.VMEM((T, block_b, 3 * H), jnp.float32)]          # fused gx
    if num_layers > 1:
        scratch.append(pltpu.VMEM((T, block_b, H), jnp.float32))      # hseq (only if used)

    # Per-block VMEM footprint: double-buffer factor on the pipelined blocks, scratch
    # counted once; cap derived from the actual chip generation.
    weight_bytes = sum(int(a.size) * a.dtype.itemsize for a in inputs[1:])
    scratch_bytes = T * block_b * 3 * H * 4 + (T * block_b * H * 4 if num_layers > 1 else 0)
    est_bytes = (2 * (T * block_b * Din + block_b * O) * 4
                 + 2 * weight_bytes + scratch_bytes)
    default_scoped = 16 * 1024 * 1024
    if est_bytes > default_scoped:
        cap = (_tpu_vmem_capacity_bytes() * 3) // 4    # headroom for compiler scratch
        vmem_limit = int(min(cap, 2 * est_bytes))
    else:
        vmem_limit = None

    kernel = functools.partial(fused_gru_kernel, num_layers=num_layers, T=T, H=H)
    return pl.pallas_call(
        kernel,
        out_shape=jax.ShapeDtypeStruct((B, O), jnp.float32),
        grid_spec=pltpu.PrefetchScalarGridSpec(
            num_scalar_prefetch=0,
            grid=grid,
            in_specs=in_specs,
            out_specs=out_spec,
            scratch_shapes=scratch),
        compiler_params=pltpu.CompilerParams(
            dimension_semantics=("parallel",),        # batch blocks across TCs (v7x)
            vmem_limit_bytes=vmem_limit),
    )(*inputs)
    # TODO(synk): for long T / large B*T*H, add a T-chunk "arbitrary" grid axis with h
    # carried in scratch so gx/hseq are per-chunk resident and DMA pipelines with compute.


# ----------------------------------------------------------------------------
# Pure-JAX reference (mirrors torch.nn.GRU + nn.Linear semantics)
# ----------------------------------------------------------------------------
def gru_forward_ref(x, params, num_layers):
    hp = jax.lax.Precision.HIGHEST    # pin precision so the 1e-5 check does not flake
    B, T, _ = x.shape
    h_in = x
    for layer in range(num_layers):
        p = params[f'l{layer}']
        H = p['w_hh'].shape[1]
        h = jnp.zeros((B, H), jnp.float32)
        outs = []
        for t in range(T):
            gx = jnp.dot(h_in[:, t, :], p['w_ih'].T, precision=hp) + p['b_ih']
            gh = jnp.dot(h, p['w_hh'].T, precision=hp) + p['b_hh']
            r = jax.nn.sigmoid(gx[:, :H] + gh[:, :H])
            z = jax.nn.sigmoid(gx[:, H:2 * H] + gh[:, H:2 * H])
            n = jnp.tanh(gx[:, 2 * H:] + r * gh[:, 2 * H:])
            h = (1.0 - z) * n + z * h
            outs.append(h)
        h_in = jnp.stack(outs, axis=1)
    last = h_in[:, -1, :]
    return jnp.dot(last, params['lin_w'].T, precision=hp) + params['lin_b']


# ----------------------------------------------------------------------------
# Main
# ----------------------------------------------------------------------------
if __name__ == "__main__":
    config = dict(input_size=16, hidden_size=32, output_size=4,
                  num_layers=2, dropout_1=0.0)

    B, T = 2, 8
    Din, H, O = config['input_size'], config['hidden_size'], config['output_size']
    L = config['num_layers']

    key = jax.random.PRNGKey(0)
    k_x, key = jax.random.split(key)
    x = jax.random.normal(k_x, (B, T, Din), jnp.float32)

    # Deterministic parameter init, PyTorch-style U(-1/sqrt(H), 1/sqrt(H)).
    bound = 1.0 / jnp.sqrt(jnp.float32(H))
    params = {}
    for layer in range(L):
        d_in = Din if layer == 0 else H
        ks = jax.random.split(key, 5)
        key = ks[0]
        params[f'l{layer}'] = {
            'w_ih': jax.random.uniform(ks[1], (3 * H, d_in), jnp.float32, -bound, bound),
            'w_hh': jax.random.uniform(ks[2], (3 * H, H), jnp.float32, -bound, bound),
            'b_ih': jax.random.uniform(ks[3], (3 * H,), jnp.float32, -bound, bound),
            'b_hh': jax.random.uniform(ks[4], (3 * H,), jnp.float32, -bound, bound),
        }
    ks = jax.random.split(key, 3)
    params['lin_w'] = jax.random.uniform(ks[1], (O, H), jnp.float32, -bound, bound)
    params['lin_b'] = jax.random.uniform(ks[2], (O,), jnp.float32, -bound, bound)

    yhat = gru_forward(x, params, L)
    yhat = jax.block_until_ready(yhat)

    yref = gru_forward_ref(x, params, L)
    assert yhat.shape == (B, O)
    assert jnp.allclose(yhat, yref, atol=1e-5, rtol=1e-5), "mismatch vs reference"

    print("KERNEL_OK")
</pallas_src>

<mosaic_0001>
module attributes {stable_mosaic.version = 11 : i64} {
  func.func @fused_gru_kernel(%arg0: i32, %arg1: memref<8x2x16xf32, #tpu.memory_space<vmem>>, %arg2: memref<16x96xf32, #tpu.memory_space<vmem>>, %arg3: memref<32x96xf32, #tpu.memory_space<vmem>>, %arg4: memref<1x96xf32, #tpu.memory_space<vmem>>, %arg5: memref<1x32xf32, #tpu.memory_space<vmem>>, %arg6: memref<32x96xf32, #tpu.memory_space<vmem>>, %arg7: memref<32x96xf32, #tpu.memory_space<vmem>>, %arg8: memref<1x96xf32, #tpu.memory_space<vmem>>, %arg9: memref<1x32xf32, #tpu.memory_space<vmem>>, %arg10: memref<32x4xf32, #tpu.memory_space<vmem>>, %arg11: memref<1x4xf32, #tpu.memory_space<vmem>>, %arg12: memref<2x4xf32, #tpu.memory_space<vmem>>, %arg13: memref<8x2x96xf32, #tpu.memory_space<vmem>>, %arg14: memref<8x2x32xf32, #tpu.memory_space<vmem>>) attributes {dimension_semantics = [#tpu.dimension_semantics<parallel>], iteration_bounds = array<i64: 1>, scalar_prefetch = 0 : i64, scratch_operands = 2 : i64, tpu.core_type = #tpu.core_type<tc>, window_params = [{transform_indices = @transform_0, window_bounds = array<i64: 8, 2, 16>}, {pipeline_mode = #tpu.pipeline_mode<synchronous>, transform_indices = @transform_1, window_bounds = array<i64: 16, 96>}, {pipeline_mode = #tpu.pipeline_mode<synchronous>, transform_indices = @transform_2, window_bounds = array<i64: 32, 96>}, {pipeline_mode = #tpu.pipeline_mode<synchronous>, transform_indices = @transform_3, window_bounds = array<i64: 1, 96>}, {pipeline_mode = #tpu.pipeline_mode<synchronous>, transform_indices = @transform_4, window_bounds = array<i64: 1, 32>}, {pipeline_mode = #tpu.pipeline_mode<synchronous>, transform_indices = @transform_5, window_bounds = array<i64: 32, 96>}, {pipeline_mode = #tpu.pipeline_mode<synchronous>, transform_indices = @transform_6, window_bounds = array<i64: 32, 96>}, {pipeline_mode = #tpu.pipeline_mode<synchronous>, transform_indices = @transform_7, window_bounds = array<i64: 1, 96>}, {pipeline_mode = #tpu.pipeline_mode<synchronous>, transform_indices = @transform_8, window_bounds = array<i64: 1, 32>}, {pipeline_mode = #tpu.pipeline_mode<synchronous>, transform_indices = @transform_9, window_bounds = array<i64: 32, 4>}, {pipeline_mode = #tpu.pipeline_mode<synchronous>, transform_indices = @transform_10, window_bounds = array<i64: 1, 4>}, {transform_indices = @transform_11, window_bounds = array<i64: 2, 4>}]} {
    %c0 = arith.constant 0 : index
    %c0_0 = arith.constant 0 : index
    %c0_1 = arith.constant 0 : index
    %0 = vector.load %arg1[%c0, %c0_0, %c0_1] : memref<8x2x16xf32, #tpu.memory_space<vmem>>, vector<8x2x16xf32>
    %1 = vector.shape_cast %0 : vector<8x2x16xf32> to vector<16x16xf32>
    %c0_2 = arith.constant 0 : index
    %c0_3 = arith.constant 0 : index
    %2 = vector.load %arg2[%c0_2, %c0_3] : memref<16x96xf32, #tpu.memory_space<vmem>>, vector<16x96xf32>
    %cst = arith.constant dense<0.000000e+00> : vector<16x96xf32>
    %3 = tpu.matmul %1, %2, %cst {dimension_numbers = #tpu.dot_dimension_numbers<[1], [0], [0], [1], [0, 0, 1, 1], [], []>} : vector<16x16xf32>, vector<16x96xf32>, vector<16x96xf32> -> vector<16x96xf32>
    %c0_4 = arith.constant 0 : index
    %c0_5 = arith.constant 0 : index
    %4 = vector.load %arg4[%c0_4, %c0_5] : memref<1x96xf32, #tpu.memory_space<vmem>>, vector<1x96xf32>
    %5 = vector.broadcast %4 : vector<1x96xf32> to vector<16x96xf32>
    %6 = arith.addf %3, %5 : vector<16x96xf32>
    %7 = vector.shape_cast %6 : vector<16x96xf32> to vector<8x2x96xf32>
    %c0_6 = arith.constant 0 : index
    %c0_7 = arith.constant 0 : index
    %c0_8 = arith.constant 0 : index
    %8 = vector.load %arg13[%c0_6, %c0_7, %c0_8] : memref<8x2x96xf32, #tpu.memory_space<vmem>>, vector<8x2x96xf32>
    tpu.vector_store %arg13[%c0_6, %c0_7, %c0_8], %7 {strides = array<i32>} : memref<8x2x96xf32, #tpu.memory_space<vmem>>, vector<8x2x96xf32>,
    %c0_9 = arith.constant 0 : index
    %c0_10 = arith.constant 0 : index
    %9 = vector.load %arg3[%c0_9, %c0_10] : memref<32x96xf32, #tpu.memory_space<vmem>>, vector<32x96xf32>
    %c0_11 = arith.constant 0 : index
    %c0_12 = arith.constant 0 : index
    %10 = vector.load %arg5[%c0_11, %c0_12] : memref<1x32xf32, #tpu.memory_space<vmem>>, vector<1x32xf32>
    %cst_13 = arith.constant 0.000000e+00 : f32
    %11 = vector.broadcast %cst_13 : f32 to vector<2x32xf32>
    %c0_i32 = arith.constant 0 : i32
    %cst_14 = arith.constant dense<0.000000e+00> : vector<2x96xf32>
    %12 = tpu.matmul %11, %9, %cst_14 {dimension_numbers = #tpu.dot_dimension_numbers<[1], [0], [0], [1], [0, 0, 1, 1], [], []>} : vector<2x32xf32>, vector<32x96xf32>, vector<2x96xf32> -> vector<2x96xf32>
    %13 = arith.index_cast %c0_i32 : i32 to index
    %c0_15 = arith.constant 0 : index
    %c0_16 = arith.constant 0 : index
    %14 = vector.load %arg13[%13, %c0_15, %c0_16] : memref<8x2x96xf32, #tpu.memory_space<vmem>>, vector<1x2x96xf32>
    %15 = vector.shape_cast %14 : vector<1x2x96xf32> to vector<2x96xf32>
    %16 = vector.extract_strided_slice %15 {offsets = [0, 0], sizes = [2, 64], strides = [1, 1]} : vector<2x96xf32> to vector<2x64xf32>
    %17 = vector.extract_strided_slice %12 {offsets = [0, 0], sizes = [2, 64], strides = [1, 1]} : vector<2x96xf32> to vector<2x64xf32>
    %18 = arith.addf %16, %17 : vector<2x64xf32>
    %19 = arith.negf %18 : vector<2x64xf32>
    %20 = math.exp %19 : vector<2x64xf32>
    %cst_17 = arith.constant 1.000000e+00 : f32
    %21 = vector.broadcast %cst_17 : f32 to vector<2x64xf32>
    %22 = arith.addf %21, %20 : vector<2x64xf32>
    %23 = arith.divf %21, %22 : vector<2x64xf32>
    %24 = vector.extract_strided_slice %23 {offsets = [0, 0], sizes = [2, 32], strides = [1, 1]} : vector<2x64xf32> to vector<2x32xf32>
    %25 = vector.extract_strided_slice %23 {offsets = [0, 32], sizes = [2, 32], strides = [1, 1]} : vector<2x64xf32> to vector<2x32xf32>
    %26 = vector.extract_strided_slice %15 {offsets = [0, 64], sizes = [2, 32], strides = [1, 1]} : vector<2x96xf32> to vector<2x32xf32>
    %27 = vector.extract_strided_slice %12 {offsets = [0, 64], sizes = [2, 32], strides = [1, 1]} : vector<2x96xf32> to vector<2x32xf32>
    %28 = vector.broadcast %10 : vector<1x32xf32> to vector<2x32xf32>
    %29 = arith.addf %27, %28 : vector<2x32xf32>
    %30 = arith.mulf %24, %29 : vector<2x32xf32>
    %31 = arith.addf %26, %30 : vector<2x32xf32>
    %32 = math.tanh %31 : vector<2x32xf32>
    %cst_18 = arith.constant 1.000000e+00 : f32
    %33 = vector.broadcast %cst_18 : f32 to vector<2x32xf32>
    %34 = arith.subf %33, %25 : vector<2x32xf32>
    %35 = arith.mulf %34, %32 : vector<2x32xf32>
    %36 = arith.mulf %25, %11 : vector<2x32xf32>
    %37 = arith.addf %35, %36 : vector<2x32xf32>
    %38 = arith.index_cast %c0_i32 : i32 to index
    %c0_19 = arith.constant 0 : index
    %c0_20 = arith.constant 0 : index
    %39 = vector.load %arg14[%38, %c0_19, %c0_20] : memref<8x2x32xf32, #tpu.memory_space<vmem>>, vector<1x2x32xf32>
    %40 = vector.shape_cast %39 : vector<1x2x32xf32> to vector<2x32xf32>
    %41 = vector.shape_cast %37 : vector<2x32xf32> to vector<1x2x32xf32>
    tpu.vector_store %arg14[%38, %c0_19, %c0_20], %41 {strides = array<i32>} : memref<8x2x32xf32, #tpu.memory_space<vmem>>, vector<1x2x32xf32>,
    %c1_i32 = arith.constant 1 : i32
    %cst_21 = arith.constant dense<0.000000e+00> : vector<2x96xf32>
    %42 = tpu.matmul %37, %9, %cst_21 {dimension_numbers = #tpu.dot_dimension_numbers<[1], [0], [0], [1], [0, 0, 1, 1], [], []>} : vector<2x32xf32>, vector<32x96xf32>, vector<2x96xf32> -> vector<2x96xf32>
    %43 = arith.index_cast %c1_i32 : i32 to index
    %c0_22 = arith.constant 0 : index
    %c0_23 = arith.constant 0 : index
    %44 = vector.load %arg13[%43, %c0_22, %c0_23] : memref<8x2x96xf32, #tpu.memory_space<vmem>>, vector<1x2x96xf32>
    %45 = vector.shape_cast %44 : vector<1x2x96xf32> to vector<2x96xf32>
    %46 = vector.extract_strided_slice %45 {offsets = [0, 0], sizes = [2, 64], strides = [1, 1]} : vector<2x96xf32> to vector<2x64xf32>
    %47 = vector.extract_strided_slice %42 {offsets = [0, 0], sizes = [2, 64], strides = [1, 1]} : vector<2x96xf32> to vector<2x64xf32>
    %48 = arith.addf %46, %47 : vector<2x64xf32>
    %49 = arith.negf %48 : vector<2x64xf32>
    %50 = math.exp %49 : vector<2x64xf32>
    %cst_24 = arith.constant 1.000000e+00 : f32
    %51 = vector.broadcast %cst_24 : f32 to vector<2x64xf32>
    %52 = arith.addf %51, %50 : vector<2x64xf32>
    %53 = arith.divf %51, %52 : vector<2x64xf32>
    %54 = vector.extract_strided_slice %53 {offsets = [0, 0], sizes = [2, 32], strides = [1, 1]} : vector<2x64xf32> to vector<2x32xf32>
    %55 = vector.extract_strided_slice %53 {offsets = [0, 32], sizes = [2, 32], strides = [1, 1]} : vector<2x64xf32> to vector<2x32xf32>
    %56 = vector.extract_strided_slice %45 {offsets = [0, 64], sizes = [2, 32], strides = [1, 1]} : vector<2x96xf32> to vector<2x32xf32>
    %57 = vector.extract_strided_slice %42 {offsets = [0, 64], sizes = [2, 32], strides = [1, 1]} : vector<2x96xf32> to vector<2x32xf32>
    %58 = vector.broadcast %10 : vector<1x32xf32> to vector<2x32xf32>
    %59 = arith.addf %57, %58 : vector<2x32xf32>
    %60 = arith.mulf %54, %59 : vector<2x32xf32>
    %61 = arith.addf %56, %60 : vector<2x32xf32>
    %62 = math.tanh %61 : vector<2x32xf32>
    %cst_25 = arith.constant 1.000000e+00 : f32
    %63 = vector.broadcast %cst_25 : f32 to vector<2x32xf32>
    %64 = arith.subf %63, %55 : vector<2x32xf32>
    %65 = arith.mulf %64, %62 : vector<2x32xf32>
    %66 = arith.mulf %55, %37 : vector<2x32xf32>
    %67 = arith.addf %65, %66 : vector<2x32xf32>
    %68 = arith.index_cast %c1_i32 : i32 to index
    %c0_26 = arith.constant 0 : index
    %c0_27 = arith.constant 0 : index
    %69 = vector.load %arg14[%68, %c0_26, %c0_27] : memref<8x2x32xf32, #tpu.memory_space<vmem>>, vector<1x2x32xf32>
    %70 = vector.shape_cast %69 : vector<1x2x32xf32> to vector<2x32xf32>
    %71 = vector.shape_cast %67 : vector<2x32xf32> to vector<1x2x32xf32>
    tpu.vector_store %arg14[%68, %c0_26, %c0_27], %71 {strides = array<i32>} : memref<8x2x32xf32, #tpu.memory_space<vmem>>, vector<1x2x32xf32>,
    %c2_i32 = arith.constant 2 : i32
    %cst_28 = arith.constant dense<0.000000e+00> : vector<2x96xf32>
    %72 = tpu.matmul %67, %9, %cst_28 {dimension_numbers = #tpu.dot_dimension_numbers<[1], [0], [0], [1], [0, 0, 1, 1], [], []>} : vector<2x32xf32>, vector<32x96xf32>, vector<2x96xf32> -> vector<2x96xf32>
    %73 = arith.index_cast %c2_i32 : i32 to index
    %c0_29 = arith.constant 0 : index
    %c0_30 = arith.constant 0 : index
    %74 = vector.load %arg13[%73, %c0_29, %c0_30] : memref<8x2x96xf32, #tpu.memory_space<vmem>>, vector<1x2x96xf32>
    %75 = vector.shape_cast %74 : vector<1x2x96xf32> to vector<2x96xf32>
    %76 = vector.extract_strided_slice %75 {offsets = [0, 0], sizes = [2, 64], strides = [1, 1]} : vector<2x96xf32> to vector<2x64xf32>
    %77 = vector.extract_strided_slice %72 {offsets = [0, 0], sizes = [2, 64], strides = [1, 1]} : vector<2x96xf32> to vector<2x64xf32>
    %78 = arith.addf %76, %77 : vector<2x64xf32>
    %79 = arith.negf %78 : vector<2x64xf32>
    %80 = math.exp %79 : vector<2x64xf32>
    %cst_31 = arith.constant 1.000000e+00 : f32
    %81 = vector.broadcast %cst_31 : f32 to vector<2x64xf32>
    %82 = arith.addf %81, %80 : vector<2x64xf32>
    %83 = arith.divf %81, %82 : vector<2x64xf32>
    %84 = vector.extract_strided_slice %83 {offsets = [0, 0], sizes = [2, 32], strides = [1, 1]} : vector<2x64xf32> to vector<2x32xf32>
    %85 = vector.extract_strided_slice %83 {offsets = [0, 32], sizes = [2, 32], strides = [1, 1]} : vector<2x64xf32> to vector<2x32xf32>
    %86 = vector.extract_strided_slice %75 {offsets = [0, 64], sizes = [2, 32], strides = [1, 1]} : vector<2x96xf32> to vector<2x32xf32>
    %87 = vector.extract_strided_slice %72 {offsets = [0, 64], sizes = [2, 32], strides = [1, 1]} : vector<2x96xf32> to vector<2x32xf32>
    %88 = vector.broadcast %10 : vector<1x32xf32> to vector<2x32xf32>
    %89 = arith.addf %87, %88 : vector<2x32xf32>
    %90 = arith.mulf %84, %89 : vector<2x32xf32>
    %91 = arith.addf %86, %90 : vector<2x32xf32>
    %92 = math.tanh %91 : vector<2x32xf32>
    %cst_32 = arith.constant 1.000000e+00 : f32
    %93 = vector.broadcast %cst_32 : f32 to vector<2x32xf32>
    %94 = arith.subf %93, %85 : vector<2x32xf32>
    %95 = arith.mulf %94, %92 : vector<2x32xf32>
    %96 = arith.mulf %85, %67 : vector<2x32xf32>
    %97 = arith.addf %95, %96 : vector<2x32xf32>
    %98 = arith.index_cast %c2_i32 : i32 to index
    %c0_33 = arith.constant 0 : index
    %c0_34 = arith.constant 0 : index
    %99 = vector.load %arg14[%98, %c0_33, %c0_34] : memref<8x2x32xf32, #tpu.memory_space<vmem>>, vector<1x2x32xf32>
    %100 = vector.shape_cast %99 : vector<1x2x32xf32> to vector<2x32xf32>
    %101 = vector.shape_cast %97 : vector<2x32xf32> to vector<1x2x32xf32>
    tpu.vector_store %arg14[%98, %c0_33, %c0_34], %101 {strides = array<i32>} : memref<8x2x32xf32, #tpu.memory_space<vmem>>, vector<1x2x32xf32>,
    %c3_i32 = arith.constant 3 : i32
    %cst_35 = arith.constant dense<0.000000e+00> : vector<2x96xf32>
    %102 = tpu.matmul %97, %9, %cst_35 {dimension_numbers = #tpu.dot_dimension_numbers<[1], [0], [0], [1], [0, 0, 1, 1], [], []>} : vector<2x32xf32>, vector<32x96xf32>, vector<2x96xf32> -> vector<2x96xf32>
    %103 = arith.index_cast %c3_i32 : i32 to index
    %c0_36 = arith.constant 0 : index
    %c0_37 = arith.constant 0 : index
    %104 = vector.load %arg13[%103, %c0_36, %c0_37] : memref<8x2x96xf32, #tpu.memory_space<vmem>>, vector<1x2x96xf32>
    %105 = vector.shape_cast %104 : vector<1x2x96xf32> to vector<2x96xf32>
    %106 = vector.extract_strided_slice %105 {offsets = [0, 0], sizes = [2, 64], strides = [1, 1]} : vector<2x96xf32> to vector<2x64xf32>
    %107 = vector.extract_strided_slice %102 {offsets = [0, 0], sizes = [2, 64], strides = [1, 1]} : vector<2x96xf32> to vector<2x64xf32>
    %108 = arith.addf %106, %107 : vector<2x64xf32>
    %109 = arith.negf %108 : vector<2x64xf32>
    %110 = math.exp %109 : vector<2x64xf32>
    %cst_38 = arith.constant 1.000000e+00 : f32
    %111 = vector.broadcast %cst_38 : f32 to vector<2x64xf32>
    %112 = arith.addf %111, %110 : vector<2x64xf32>
    %113 = arith.divf %111, %112 : vector<2x64xf32>
    %114 = vector.extract_strided_slice %113 {offsets = [0, 0], sizes = [2, 32], strides = [1, 1]} : vector<2x64xf32> to vector<2x32xf32>
    %115 = vector.extract_strided_slice %113 {offsets = [0, 32], sizes = [2, 32], strides = [1, 1]} : vector<2x64xf32> to vector<2x32xf32>
    %116 = vector.extract_strided_slice %105 {offsets = [0, 64], sizes = [2, 32], strides = [1, 1]} : vector<2x96xf32> to vector<2x32xf32>
    %117 = vector.extract_strided_slice %102 {offsets = [0, 64], sizes = [2, 32], strides = [1, 1]} : vector<2x96xf32> to vector<2x32xf32>
    %118 = vector.broadcast %10 : vector<1x32xf32> to vector<2x32xf32>
    %119 = arith.addf %117, %118 : vector<2x32xf32>
    %120 = arith.mulf %114, %119 : vector<2x32xf32>
    %121 = arith.addf %116, %120 : vector<2x32xf32>
    %122 = math.tanh %121 : vector<2x32xf32>
    %cst_39 = arith.constant 1.000000e+00 : f32
    %123 = vector.broadcast %cst_39 : f32 to vector<2x32xf32>
    %124 = arith.subf %123, %115 : vector<2x32xf32>
    %125 = arith.mulf %124, %122 : vector<2x32xf32>
    %126 = arith.mulf %115, %97 : vector<2x32xf32>
    %127 = arith.addf %125, %126 : vector<2x32xf32>
    %128 = arith.index_cast %c3_i32 : i32 to index
    %c0_40 = arith.constant 0 : index
    %c0_41 = arith.constant 0 : index
    %129 = vector.load %arg14[%128, %c0_40, %c0_41] : memref<8x2x32xf32, #tpu.memory_space<vmem>>, vector<1x2x32xf32>
    %130 = vector.shape_cast %129 : vector<1x2x32xf32> to vector<2x32xf32>
    %131 = vector.shape_cast %127 : vector<2x32xf32> to vector<1x2x32xf32>
    tpu.vector_store %arg14[%128, %c0_40, %c0_41], %131 {strides = array<i32>} : memref<8x2x32xf32, #tpu.memory_space<vmem>>, vector<1x2x32xf32>,
    %c4_i32 = arith.constant 4 : i32
    %cst_42 = arith.constant dense<0.000000e+00> : vector<2x96xf32>
    %132 = tpu.matmul %127, %9, %cst_42 {dimension_numbers = #tpu.dot_dimension_numbers<[1], [0], [0], [1], [0, 0, 1, 1], [], []>} : vector<2x32xf32>, vector<32x96xf32>, vector<2x96xf32> -> vector<2x96xf32>
    %133 = arith.index_cast %c4_i32 : i32 to index
    %c0_43 = arith.constant 0 : index
    %c0_44 = arith.constant 0 : index
    %134 = vector.load %arg13[%133, %c0_43, %c0_44] : memref<8x2x96xf32, #tpu.memory_space<vmem>>, vector<1x2x96xf32>
    %135 = vector.shape_cast %134 : vector<1x2x96xf32> to vector<2x96xf32>
    %136 = vector.extract_strided_slice %135 {offsets = [0, 0], sizes = [2, 64], strides = [1, 1]} : vector<2x96xf32> to vector<2x64xf32>
    %137 = vector.extract_strided_slice %132 {offsets = [0, 0], sizes = [2, 64], strides = [1, 1]} : vector<2x96xf32> to vector<2x64xf32>
    %138 = arith.addf %136, %137 : vector<2x64xf32>
    %139 = arith.negf %138 : vector<2x64xf32>
    %140 = math.exp %139 : vector<2x64xf32>
    %cst_45 = arith.constant 1.000000e+00 : f32
    %141 = vector.broadcast %cst_45 : f32 to vector<2x64xf32>
    %142 = arith.addf %141, %140 : vector<2x64xf32>
    %143 = arith.divf %141, %142 : vector<2x64xf32>
    %144 = vector.extract_strided_slice %143 {offsets = [0, 0], sizes = [2, 32], strides = [1, 1]} : vector<2x64xf32> to vector<2x32xf32>
    %145 = vector.extract_strided_slice %143 {offsets = [0, 32], sizes = [2, 32], strides = [1, 1]} : vector<2x64xf32> to vector<2x32xf32>
    %146 = vector.extract_strided_slice %135 {offsets = [0, 64], sizes = [2, 32], strides = [1, 1]} : vector<2x96xf32> to vector<2x32xf32>
    %147 = vector.extract_strided_slice %132 {offsets = [0, 64], sizes = [2, 32], strides = [1, 1]} : vector<2x96xf32> to vector<2x32xf32>
    %148 = vector.broadcast %10 : vector<1x32xf32> to vector<2x32xf32>
    %149 = arith.addf %147, %148 : vector<2x32xf32>
    %150 = arith.mulf %144, %149 : vector<2x32xf32>
    %151 = arith.addf %146, %150 : vector<2x32xf32>
    %152 = math.tanh %151 : vector<2x32xf32>
    %cst_46 = arith.constant 1.000000e+00 : f32
    %153 = vector.broadcast %cst_46 : f32 to vector<2x32xf32>
    %154 = arith.subf %153, %145 : vector<2x32xf32>
    %155 = arith.mulf %154, %152 : vector<2x32xf32>
    %156 = arith.mulf %145, %127 : vector<2x32xf32>
    %157 = arith.addf %155, %156 : vector<2x32xf32>
    %158 = arith.index_cast %c4_i32 : i32 to index
    %c0_47 = arith.constant 0 : index
    %c0_48 = arith.constant 0 : index
    %159 = vector.load %arg14[%158, %c0_47, %c0_48] : memref<8x2x32xf32, #tpu.memory_space<vmem>>, vector<1x2x32xf32>
    %160 = vector.shape_cast %159 : vector<1x2x32xf32> to vector<2x32xf32>
    %161 = vector.shape_cast %157 : vector<2x32xf32> to vector<1x2x32xf32>
    tpu.vector_store %arg14[%158, %c0_47, %c0_48], %161 {strides = array<i32>} : memref<8x2x32xf32, #tpu.memory_space<vmem>>, vector<1x2x32xf32>,
    %c5_i32 = arith.constant 5 : i32
    %cst_49 = arith.constant dense<0.000000e+00> : vector<2x96xf32>
    %162 = tpu.matmul %157, %9, %cst_49 {dimension_numbers = #tpu.dot_dimension_numbers<[1], [0], [0], [1], [0, 0, 1, 1], [], []>} : vector<2x32xf32>, vector<32x96xf32>, vector<2x96xf32> -> vector<2x96xf32>
    %163 = arith.index_cast %c5_i32 : i32 to index
    %c0_50 = arith.constant 0 : index
    %c0_51 = arith.constant 0 : index
    %164 = vector.load %arg13[%163, %c0_50, %c0_51] : memref<8x2x96xf32, #tpu.memory_space<vmem>>, vector<1x2x96xf32>
    %165 = vector.shape_cast %164 : vector<1x2x96xf32> to vector<2x96xf32>
    %166 = vector.extract_strided_slice %165 {offsets = [0, 0], sizes = [2, 64], strides = [1, 1]} : vector<2x96xf32> to vector<2x64xf32>
    %167 = vector.extract_strided_slice %162 {offsets = [0, 0], sizes = [2, 64], strides = [1, 1]} : vector<2x96xf32> to vector<2x64xf32>
    %168 = arith.addf %166, %167 : vector<2x64xf32>
    %169 = arith.negf %168 : vector<2x64xf32>
    %170 = math.exp %169 : vector<2x64xf32>
    %cst_52 = arith.constant 1.000000e+00 : f32
    %171 = vector.broadcast %cst_52 : f32 to vector<2x64xf32>
    %172 = arith.addf %171, %170 : vector<2x64xf32>
    %173 = arith.divf %171, %172 : vector<2x64xf32>
    %174 = vector.extract_strided_slice %173 {offsets = [0, 0], sizes = [2, 32], strides = [1, 1]} : vector<2x64xf32> to vector<2x32xf32>
    %175 = vector.extract_strided_slice %173 {offsets = [0, 32], sizes = [2, 32], strides = [1, 1]} : vector<2x64xf32> to vector<2x32xf32>
    %176 = vector.extract_strided_slice %165 {offsets = [0, 64], sizes = [2, 32], strides = [1, 1]} : vector<2x96xf32> to vector<2x32xf32>
    %177 = vector.extract_strided_slice %162 {offsets = [0, 64], sizes = [2, 32], strides = [1, 1]} : vector<2x96xf32> to vector<2x32xf32>
    %178 = vector.broadcast %10 : vector<1x32xf32> to vector<2x32xf32>
    %179 = arith.addf %177, %178 : vector<2x32xf32>
    %180 = arith.mulf %174, %179 : vector<2x32xf32>
    %181 = arith.addf %176, %180 : vector<2x32xf32>
    %182 = math.tanh %181 : vector<2x32xf32>
    %cst_53 = arith.constant 1.000000e+00 : f32
    %183 = vector.broadcast %cst_53 : f32 to vector<2x32xf32>
    %184 = arith.subf %183, %175 : vector<2x32xf32>
    %185 = arith.mulf %184, %182 : vector<2x32xf32>
    %186 = arith.mulf %175, %157 : vector<2x32xf32>
    %187 = arith.addf %185, %186 : vector<2x32xf32>
    %188 = arith.index_cast %c5_i32 : i32 to index
    %c0_54 = arith.constant 0 : index
    %c0_55 = arith.constant 0 : index
    %189 = vector.load %arg14[%188, %c0_54, %c0_55] : memref<8x2x32xf32, #tpu.memory_space<vmem>>, vector<1x2x32xf32>
    %190 = vector.shape_cast %189 : vector<1x2x32xf32> to vector<2x32xf32>
    %191 = vector.shape_cast %187 : vector<2x32xf32> to vector<1x2x32xf32>
    tpu.vector_store %arg14[%188, %c0_54, %c0_55], %191 {strides = array<i32>} : memref<8x2x32xf32, #tpu.memory_space<vmem>>, vector<1x2x32xf32>,
    %c6_i32 = arith.constant 6 : i32
    %cst_56 = arith.constant dense<0.000000e+00> : vector<2x96xf32>
    %192 = tpu.matmul %187, %9, %cst_56 {dimension_numbers = #tpu.dot_dimension_numbers<[1], [0], [0], [1], [0, 0, 1, 1], [], []>} : vector<2x32xf32>, vector<32x96xf32>, vector<2x96xf32> -> vector<2x96xf32>
    %193 = arith.index_cast %c6_i32 : i32 to index
    %c0_57 = arith.constant 0 : index
    %c0_58 = arith.constant 0 : index
    %194 = vector.load %arg13[%193, %c0_57, %c0_58] : memref<8x2x96xf32, #tpu.memory_space<vmem>>, vector<1x2x96xf32>
    %195 = vector.shape_cast %194 : vector<1x2x96xf32> to vector<2x96xf32>
    %196 = vector.extract_strided_slice %195 {offsets = [0, 0], sizes = [2, 64], strides = [1, 1]} : vector<2x96xf32> to vector<2x64xf32>
    %197 = vector.extract_strided_slice %192 {offsets = [0, 0], sizes = [2, 64], strides = [1, 1]} : vector<2x96xf32> to vector<2x64xf32>
    %198 = arith.addf %196, %197 : vector<2x64xf32>
    %199 = arith.negf %198 : vector<2x64xf32>
    %200 = math.exp %199 : vector<2x64xf32>
    %cst_59 = arith.constant 1.000000e+00 : f32
    %201 = vector.broadcast %cst_59 : f32 to vector<2x64xf32>
    %202 = arith.addf %201, %200 : vector<2x64xf32>
    %203 = arith.divf %201, %202 : vector<2x64xf32>
    %204 = vector.extract_strided_slice %203 {offsets = [0, 0], sizes = [2, 32], strides = [1, 1]} : vector<2x64xf32> to vector<2x32xf32>
    %205 = vector.extract_strided_slice %203 {offsets = [0, 32], sizes = [2, 32], strides = [1, 1]} : vector<2x64xf32> to vector<2x32xf32>
    %206 = vector.extract_strided_slice %195 {offsets = [0, 64], sizes = [2, 32], strides = [1, 1]} : vector<2x96xf32> to vector<2x32xf32>
    %207 = vector.extract_strided_slice %192 {offsets = [0, 64], sizes = [2, 32], strides = [1, 1]} : vector<2x96xf32> to vector<2x32xf32>
    %208 = vector.broadcast %10 : vector<1x32xf32> to vector<2x32xf32>
    %209 = arith.addf %207, %208 : vector<2x32xf32>
    %210 = arith.mulf %204, %209 : vector<2x32xf32>
    %211 = arith.addf %206, %210 : vector<2x32xf32>
    %212 = math.tanh %211 : vector<2x32xf32>
    %cst_60 = arith.constant 1.000000e+00 : f32
    %213 = vector.broadcast %cst_60 : f32 to vector<2x32xf32>
    %214 = arith.subf %213, %205 : vector<2x32xf32>
    %215 = arith.mulf %214, %212 : vector<2x32xf32>
    %216 = arith.mulf %205, %187 : vector<2x32xf32>
    %217 = arith.addf %215, %216 : vector<2x32xf32>
    %218 = arith.index_cast %c6_i32 : i32 to index
    %c0_61 = arith.constant 0 : index
    %c0_62 = arith.constant 0 : index
    %219 = vector.load %arg14[%218, %c0_61, %c0_62] : memref<8x2x32xf32, #tpu.memory_space<vmem>>, vector<1x2x32xf32>
    %220 = vector.shape_cast %219 : vector<1x2x32xf32> to vector<2x32xf32>
    %221 = vector.shape_cast %217 : vector<2x32xf32> to vector<1x2x32xf32>
    tpu.vector_store %arg14[%218, %c0_61, %c0_62], %221 {strides = array<i32>} : memref<8x2x32xf32, #tpu.memory_space<vmem>>, vector<1x2x32xf32>,
    %c7_i32 = arith.constant 7 : i32
    %cst_63 = arith.constant dense<0.000000e+00> : vector<2x96xf32>
    %222 = tpu.matmul %217, %9, %cst_63 {dimension_numbers = #tpu.dot_dimension_numbers<[1], [0], [0], [1], [0, 0, 1, 1], [], []>} : vector<2x32xf32>, vector<32x96xf32>, vector<2x96xf32> -> vector<2x96xf32>
    %223 = arith.index_cast %c7_i32 : i32 to index
    %c0_64 = arith.constant 0 : index
    %c0_65 = arith.constant 0 : index
    %224 = vector.load %arg13[%223, %c0_64, %c0_65] : memref<8x2x96xf32, #tpu.memory_space<vmem>>, vector<1x2x96xf32>
    %225 = vector.shape_cast %224 : vector<1x2x96xf32> to vector<2x96xf32>
    %226 = vector.extract_strided_slice %225 {offsets = [0, 0], sizes = [2, 64], strides = [1, 1]} : vector<2x96xf32> to vector<2x64xf32>
    %227 = vector.extract_strided_slice %222 {offsets = [0, 0], sizes = [2, 64], strides = [1, 1]} : vector<2x96xf32> to vector<2x64xf32>
    %228 = arith.addf %226, %227 : vector<2x64xf32>
    %229 = arith.negf %228 : vector<2x64xf32>
    %230 = math.exp %229 : vector<2x64xf32>
    %cst_66 = arith.constant 1.000000e+00 : f32
    %231 = vector.broadcast %cst_66 : f32 to vector<2x64xf32>
    %232 = arith.addf %231, %230 : vector<2x64xf32>
    %233 = arith.divf %231, %232 : vector<2x64xf32>
    %234 = vector.extract_strided_slice %233 {offsets = [0, 0], sizes = [2, 32], strides = [1, 1]} : vector<2x64xf32> to vector<2x32xf32>
    %235 = vector.extract_strided_slice %233 {offsets = [0, 32], sizes = [2, 32], strides = [1, 1]} : vector<2x64xf32> to vector<2x32xf32>
    %236 = vector.extract_strided_slice %225 {offsets = [0, 64], sizes = [2, 32], strides = [1, 1]} : vector<2x96xf32> to vector<2x32xf32>
    %237 = vector.extract_strided_slice %222 {offsets = [0, 64], sizes = [2, 32], strides = [1, 1]} : vector<2x96xf32> to vector<2x32xf32>
    %238 = vector.broadcast %10 : vector<1x32xf32> to vector<2x32xf32>
    %239 = arith.addf %237, %238 : vector<2x32xf32>
    %240 = arith.mulf %234, %239 : vector<2x32xf32>
    %241 = arith.addf %236, %240 : vector<2x32xf32>
    %242 = math.tanh %241 : vector<2x32xf32>
    %cst_67 = arith.constant 1.000000e+00 : f32
    %243 = vector.broadcast %cst_67 : f32 to vector<2x32xf32>
    %244 = arith.subf %243, %235 : vector<2x32xf32>
    %245 = arith.mulf %244, %242 : vector<2x32xf32>
    %246 = arith.mulf %235, %217 : vector<2x32xf32>
    %247 = arith.addf %245, %246 : vector<2x32xf32>
    %248 = arith.index_cast %c7_i32 : i32 to index
    %c0_68 = arith.constant 0 : index
    %c0_69 = arith.constant 0 : index
    %249 = vector.load %arg14[%248, %c0_68, %c0_69] : memref<8x2x32xf32, #tpu.memory_space<vmem>>, vector<1x2x32xf32>
    %250 = vector.shape_cast %249 : vector<1x2x32xf32> to vector<2x32xf32>
    %251 = vector.shape_cast %247 : vector<2x32xf32> to vector<1x2x32xf32>
    tpu.vector_store %arg14[%248, %c0_68, %c0_69], %251 {strides = array<i32>} : memref<8x2x32xf32, #tpu.memory_space<vmem>>, vector<1x2x32xf32>,
    %c8_i32 = arith.constant 8 : i32
    %c0_70 = arith.constant 0 : index
    %c0_71 = arith.constant 0 : index
    %c0_72 = arith.constant 0 : index
    %252 = vector.load %arg14[%c0_70, %c0_71, %c0_72] : memref<8x2x32xf32, #tpu.memory_space<vmem>>, vector<8x2x32xf32>
    %253 = vector.shape_cast %252 : vector<8x2x32xf32> to vector<16x32xf32>
    %c0_73 = arith.constant 0 : index
    %c0_74 = arith.constant 0 : index
    %254 = vector.load %arg6[%c0_73, %c0_74] : memref<32x96xf32, #tpu.memory_space<vmem>>, vector<32x96xf32>
    %cst_75 = arith.constant dense<0.000000e+00> : vector<16x96xf32>
    %255 = tpu.matmul %253, %254, %cst_75 {dimension_numbers = #tpu.dot_dimension_numbers<[1], [0], [0], [1], [0, 0, 1, 1], [], []>} : vector<16x32xf32>, vector<32x96xf32>, vector<16x96xf32> -> vector<16x96xf32>
    %c0_76 = arith.constant 0 : index
    %c0_77 = arith.constant 0 : index
    %256 = vector.load %arg8[%c0_76, %c0_77] : memref<1x96xf32, #tpu.memory_space<vmem>>, vector<1x96xf32>
    %257 = vector.broadcast %256 : vector<1x96xf32> to vector<16x96xf32>
    %258 = arith.addf %255, %257 : vector<16x96xf32>
    %259 = vector.shape_cast %258 : vector<16x96xf32> to vector<8x2x96xf32>
    %c0_78 = arith.constant 0 : index
    %c0_79 = arith.constant 0 : index
    %c0_80 = arith.constant 0 : index
    %260 = vector.load %arg13[%c0_78, %c0_79, %c0_80] : memref<8x2x96xf32, #tpu.memory_space<vmem>>, vector<8x2x96xf32>
    tpu.vector_store %arg13[%c0_78, %c0_79, %c0_80], %259 {strides = array<i32>} : memref<8x2x96xf32, #tpu.memory_space<vmem>>, vector<8x2x96xf32>,
    %c0_81 = arith.constant 0 : index
    %c0_82 = arith.constant 0 : index
    %261 = vector.load %arg7[%c0_81, %c0_82] : memref<32x96xf32, #tpu.memory_space<vmem>>, vector<32x96xf32>
    %c0_83 = arith.constant 0 : index
    %c0_84 = arith.constant 0 : index
    %262 = vector.load %arg9[%c0_83, %c0_84] : memref<1x32xf32, #tpu.memory_space<vmem>>, vector<1x32xf32>
    %cst_85 = arith.constant 0.000000e+00 : f32
    %263 = vector.broadcast %cst_85 : f32 to vector<2x32xf32>
    %c0_i32_86 = arith.constant 0 : i32
    %cst_87 = arith.constant dense<0.000000e+00> : vector<2x96xf32>
    %264 = tpu.matmul %263, %261, %cst_87 {dimension_numbers = #tpu.dot_dimension_numbers<[1], [0], [0], [1], [0, 0, 1, 1], [], []>} : vector<2x32xf32>, vector<32x96xf32>, vector<2x96xf32> -> vector<2x96xf32>
    %265 = arith.index_cast %c0_i32_86 : i32 to index
    %c0_88 = arith.constant 0 : index
    %c0_89 = arith.constant 0 : index
    %266 = vector.load %arg13[%265, %c0_88, %c0_89] : memref<8x2x96xf32, #tpu.memory_space<vmem>>, vector<1x2x96xf32>
    %267 = vector.shape_cast %266 : vector<1x2x96xf32> to vector<2x96xf32>
    %268 = vector.extract_strided_slice %267 {offsets = [0, 0], sizes = [2, 64], strides = [1, 1]} : vector<2x96xf32> to vector<2x64xf32>
    %269 = vector.extract_strided_slice %264 {offsets = [0, 0], sizes = [2, 64], strides = [1, 1]} : vector<2x96xf32> to vector<2x64xf32>
    %270 = arith.addf %268, %269 : vector<2x64xf32>
    %271 = arith.negf %270 : vector<2x64xf32>
    %272 = math.exp %271 : vector<2x64xf32>
    %cst_90 = arith.constant 1.000000e+00 : f32
    %273 = vector.broadcast %cst_90 : f32 to vector<2x64xf32>
    %274 = arith.addf %273, %272 : vector<2x64xf32>
    %275 = arith.divf %273, %274 : vector<2x64xf32>
    %276 = vector.extract_strided_slice %275 {offsets = [0, 0], sizes = [2, 32], strides = [1, 1]} : vector<2x64xf32> to vector<2x32xf32>
    %277 = vector.extract_strided_slice %275 {offsets = [0, 32], sizes = [2, 32], strides = [1, 1]} : vector<2x64xf32> to vector<2x32xf32>
    %278 = vector.extract_strided_slice %267 {offsets = [0, 64], sizes = [2, 32], strides = [1, 1]} : vector<2x96xf32> to vector<2x32xf32>
    %279 = vector.extract_strided_slice %264 {offsets = [0, 64], sizes = [2, 32], strides = [1, 1]} : vector<2x96xf32> to vector<2x32xf32>
    %280 = vector.broadcast %262 : vector<1x32xf32> to vector<2x32xf32>
    %281 = arith.addf %279, %280 : vector<2x32xf32>
    %282 = arith.mulf %276, %281 : vector<2x32xf32>
    %283 = arith.addf %278, %282 : vector<2x32xf32>
    %284 = math.tanh %283 : vector<2x32xf32>
    %cst_91 = arith.constant 1.000000e+00 : f32
    %285 = vector.broadcast %cst_91 : f32 to vector<2x32xf32>
    %286 = arith.subf %285, %277 : vector<2x32xf32>
    %287 = arith.mulf %286, %284 : vector<2x32xf32>
    %288 = arith.mulf %277, %263 : vector<2x32xf32>
    %289 = arith.addf %287, %288 : vector<2x32xf32>
    %c1_i32_92 = arith.constant 1 : i32
    %cst_93 = arith.constant dense<0.000000e+00> : vector<2x96xf32>
    %290 = tpu.matmul %289, %261, %cst_93 {dimension_numbers = #tpu.dot_dimension_numbers<[1], [0], [0], [1], [0, 0, 1, 1], [], []>} : vector<2x32xf32>, vector<32x96xf32>, vector<2x96xf32> -> vector<2x96xf32>
    %291 = arith.index_cast %c1_i32_92 : i32 to index
    %c0_94 = arith.constant 0 : index
    %c0_95 = arith.constant 0 : index
    %292 = vector.load %arg13[%291, %c0_94, %c0_95] : memref<8x2x96xf32, #tpu.memory_space<vmem>>, vector<1x2x96xf32>
    %293 = vector.shape_cast %292 : vector<1x2x96xf32> to vector<2x96xf32>
    %294 = vector.extract_strided_slice %293 {offsets = [0, 0], sizes = [2, 64], strides = [1, 1]} : vector<2x96xf32> to vector<2x64xf32>
    %295 = vector.extract_strided_slice %290 {offsets = [0, 0], sizes = [2, 64], strides = [1, 1]} : vector<2x96xf32> to vector<2x64xf32>
    %296 = arith.addf %294, %295 : vector<2x64xf32>
    %297 = arith.negf %296 : vector<2x64xf32>
    %298 = math.exp %297 : vector<2x64xf32>
    %cst_96 = arith.constant 1.000000e+00 : f32
    %299 = vector.broadcast %cst_96 : f32 to vector<2x64xf32>
    %300 = arith.addf %299, %298 : vector<2x64xf32>
    %301 = arith.divf %299, %300 : vector<2x64xf32>
    %302 = vector.extract_strided_slice %301 {offsets = [0, 0], sizes = [2, 32], strides = [1, 1]} : vector<2x64xf32> to vector<2x32xf32>
    %303 = vector.extract_strided_slice %301 {offsets = [0, 32], sizes = [2, 32], strides = [1, 1]} : vector<2x64xf32> to vector<2x32xf32>
    %304 = vector.extract_strided_slice %293 {offsets = [0, 64], sizes = [2, 32], strides = [1, 1]} : vector<2x96xf32> to vector<2x32xf32>
    %305 = vector.extract_strided_slice %290 {offsets = [0, 64], sizes = [2, 32], strides = [1, 1]} : vector<2x96xf32> to vector<2x32xf32>
    %306 = vector.broadcast %262 : vector<1x32xf32> to vector<2x32xf32>
    %307 = arith.addf %305, %306 : vector<2x32xf32>
    %308 = arith.mulf %302, %307 : vector<2x32xf32>
    %309 = arith.addf %304, %308 : vector<2x32xf32>
    %310 = math.tanh %309 : vector<2x32xf32>
    %cst_97 = arith.constant 1.000000e+00 : f32
    %311 = vector.broadcast %cst_97 : f32 to vector<2x32xf32>
    %312 = arith.subf %311, %303 : vector<2x32xf32>
    %313 = arith.mulf %312, %310 : vector<2x32xf32>
    %314 = arith.mulf %303, %289 : vector<2x32xf32>
    %315 = arith.addf %313, %314 : vector<2x32xf32>
    %c2_i32_98 = arith.constant 2 : i32
    %cst_99 = arith.constant dense<0.000000e+00> : vector<2x96xf32>
    %316 = tpu.matmul %315, %261, %cst_99 {dimension_numbers = #tpu.dot_dimension_numbers<[1], [0], [0], [1], [0, 0, 1, 1], [], []>} : vector<2x32xf32>, vector<32x96xf32>, vector<2x96xf32> -> vector<2x96xf32>
    %317 = arith.index_cast %c2_i32_98 : i32 to index
    %c0_100 = arith.constant 0 : index
    %c0_101 = arith.constant 0 : index
    %318 = vector.load %arg13[%317, %c0_100, %c0_101] : memref<8x2x96xf32, #tpu.memory_space<vmem>>, vector<1x2x96xf32>
    %319 = vector.shape_cast %318 : vector<1x2x96xf32> to vector<2x96xf32>
    %320 = vector.extract_strided_slice %319 {offsets = [0, 0], sizes = [2, 64], strides = [1, 1]} : vector<2x96xf32> to vector<2x64xf32>
    %321 = vector.extract_strided_slice %316 {offsets = [0, 0], sizes = [2, 64], strides = [1, 1]} : vector<2x96xf32> to vector<2x64xf32>
    %322 = arith.addf %320, %321 : vector<2x64xf32>
    %323 = arith.negf %322 : vector<2x64xf32>
    %324 = math.exp %323 : vector<2x64xf32>
    %cst_102 = arith.constant 1.000000e+00 : f32
    %325 = vector.broadcast %cst_102 : f32 to vector<2x64xf32>
    %326 = arith.addf %325, %324 : vector<2x64xf32>
    %327 = arith.divf %325, %326 : vector<2x64xf32>
    %328 = vector.extract_strided_slice %327 {offsets = [0, 0], sizes = [2, 32], strides = [1, 1]} : vector<2x64xf32> to vector<2x32xf32>
    %329 = vector.extract_strided_slice %327 {offsets = [0, 32], sizes = [2, 32], strides = [1, 1]} : vector<2x64xf32> to vector<2x32xf32>
    %330 = vector.extract_strided_slice %319 {offsets = [0, 64], sizes = [2, 32], strides = [1, 1]} : vector<2x96xf32> to vector<2x32xf32>
    %331 = vector.extract_strided_slice %316 {offsets = [0, 64], sizes = [2, 32], strides = [1, 1]} : vector<2x96xf32> to vector<2x32xf32>
    %332 = vector.broadcast %262 : vector<1x32xf32> to vector<2x32xf32>
    %333 = arith.addf %331, %332 : vector<2x32xf32>
    %334 = arith.mulf %328, %333 : vector<2x32xf32>
    %335 = arith.addf %330, %334 : vector<2x32xf32>
    %336 = math.tanh %335 : vector<2x32xf32>
    %cst_103 = arith.constant 1.000000e+00 : f32
    %337 = vector.broadcast %cst_103 : f32 to vector<2x32xf32>
    %338 = arith.subf %337, %329 : vector<2x32xf32>
    %339 = arith.mulf %338, %336 : vector<2x32xf32>
    %340 = arith.mulf %329, %315 : vector<2x32xf32>
    %341 = arith.addf %339, %340 : vector<2x32xf32>
    %c3_i32_104 = arith.constant 3 : i32
    %cst_105 = arith.constant dense<0.000000e+00> : vector<2x96xf32>
    %342 = tpu.matmul %341, %261, %cst_105 {dimension_numbers = #tpu.dot_dimension_numbers<[1], [0], [0], [1], [0, 0, 1, 1], [], []>} : vector<2x32xf32>, vector<32x96xf32>, vector<2x96xf32> -> vector<2x96xf32>
    %343 = arith.index_cast %c3_i32_104 : i32 to index
    %c0_106 = arith.constant 0 : index
    %c0_107 = arith.constant 0 : index
    %344 = vector.load %arg13[%343, %c0_106, %c0_107] : memref<8x2x96xf32, #tpu.memory_space<vmem>>, vector<1x2x96xf32>
    %345 = vector.shape_cast %344 : vector<1x2x96xf32> to vector<2x96xf32>
    %346 = vector.extract_strided_slice %345 {offsets = [0, 0], sizes = [2, 64], strides = [1, 1]} : vector<2x96xf32> to vector<2x64xf32>
    %347 = vector.extract_strided_slice %342 {offsets = [0, 0], sizes = [2, 64], strides = [1, 1]} : vector<2x96xf32> to vector<2x64xf32>
    %348 = arith.addf %346, %347 : vector<2x64xf32>
    %349 = arith.negf %348 : vector<2x64xf32>
    %350 = math.exp %349 : vector<2x64xf32>
    %cst_108 = arith.constant 1.000000e+00 : f32
    %351 = vector.broadcast %cst_108 : f32 to vector<2x64xf32>
    %352 = arith.addf %351, %350 : vector<2x64xf32>
    %353 = arith.divf %351, %352 : vector<2x64xf32>
    %354 = vector.extract_strided_slice %353 {offsets = [0, 0], sizes = [2, 32], strides = [1, 1]} : vector<2x64xf32> to vector<2x32xf32>
    %355 = vector.extract_strided_slice %353 {offsets = [0, 32], sizes = [2, 32], strides = [1, 1]} : vector<2x64xf32> to vector<2x32xf32>
    %356 = vector.extract_strided_slice %345 {offsets = [0, 64], sizes = [2, 32], strides = [1, 1]} : vector<2x96xf32> to vector<2x32xf32>
    %357 = vector.extract_strided_slice %342 {offsets = [0, 64], sizes = [2, 32], strides = [1, 1]} : vector<2x96xf32> to vector<2x32xf32>
    %358 = vector.broadcast %262 : vector<1x32xf32> to vector<2x32xf32>
    %359 = arith.addf %357, %358 : vector<2x32xf32>
    %360 = arith.mulf %354, %359 : vector<2x32xf32>
    %361 = arith.addf %356, %360 : vector<2x32xf32>
    %362 = math.tanh %361 : vector<2x32xf32>
    %cst_109 = arith.constant 1.000000e+00 : f32
    %363 = vector.broadcast %cst_109 : f32 to vector<2x32xf32>
    %364 = arith.subf %363, %355 : vector<2x32xf32>
    %365 = arith.mulf %364, %362 : vector<2x32xf32>
    %366 = arith.mulf %355, %341 : vector<2x32xf32>
    %367 = arith.addf %365, %366 : vector<2x32xf32>
    %c4_i32_110 = arith.constant 4 : i32
    %cst_111 = arith.constant dense<0.000000e+00> : vector<2x96xf32>
    %368 = tpu.matmul %367, %261, %cst_111 {dimension_numbers = #tpu.dot_dimension_numbers<[1], [0], [0], [1], [0, 0, 1, 1], [], []>} : vector<2x32xf32>, vector<32x96xf32>, vector<2x96xf32> -> vector<2x96xf32>
    %369 = arith.index_cast %c4_i32_110 : i32 to index
    %c0_112 = arith.constant 0 : index
    %c0_113 = arith.constant 0 : index
    %370 = vector.load %arg13[%369, %c0_112, %c0_113] : memref<8x2x96xf32, #tpu.memory_space<vmem>>, vector<1x2x96xf32>
    %371 = vector.shape_cast %370 : vector<1x2x96xf32> to vector<2x96xf32>
    %372 = vector.extract_strided_slice %371 {offsets = [0, 0], sizes = [2, 64], strides = [1, 1]} : vector<2x96xf32> to vector<2x64xf32>
    %373 = vector.extract_strided_slice %368 {offsets = [0, 0], sizes = [2, 64], strides = [1, 1]} : vector<2x96xf32> to vector<2x64xf32>
    %374 = arith.addf %372, %373 : vector<2x64xf32>
    %375 = arith.negf %374 : vector<2x64xf32>
    %376 = math.exp %375 : vector<2x64xf32>
    %cst_114 = arith.constant 1.000000e+00 : f32
    %377 = vector.broadcast %cst_114 : f32 to vector<2x64xf32>
    %378 = arith.addf %377, %376 : vector<2x64xf32>
    %379 = arith.divf %377, %378 : vector<2x64xf32>
    %380 = vector.extract_strided_slice %379 {offsets = [0, 0], sizes = [2, 32], strides = [1, 1]} : vector<2x64xf32> to vector<2x32xf32>
    %381 = vector.extract_strided_slice %379 {offsets = [0, 32], sizes = [2, 32], strides = [1, 1]} : vector<2x64xf32> to vector<2x32xf32>
    %382 = vector.extract_strided_slice %371 {offsets = [0, 64], sizes = [2, 32], strides = [1, 1]} : vector<2x96xf32> to vector<2x32xf32>
    %383 = vector.extract_strided_slice %368 {offsets = [0, 64], sizes = [2, 32], strides = [1, 1]} : vector<2x96xf32> to vector<2x32xf32>
    %384 = vector.broadcast %262 : vector<1x32xf32> to vector<2x32xf32>
    %385 = arith.addf %383, %384 : vector<2x32xf32>
    %386 = arith.mulf %380, %385 : vector<2x32xf32>
    %387 = arith.addf %382, %386 : vector<2x32xf32>
    %388 = math.tanh %387 : vector<2x32xf32>
    %cst_115 = arith.constant 1.000000e+00 : f32
    %389 = vector.broadcast %cst_115 : f32 to vector<2x32xf32>
    %390 = arith.subf %389, %381 : vector<2x32xf32>
    %391 = arith.mulf %390, %388 : vector<2x32xf32>
    %392 = arith.mulf %381, %367 : vector<2x32xf32>
    %393 = arith.addf %391, %392 : vector<2x32xf32>
    %c5_i32_116 = arith.constant 5 : i32
    %cst_117 = arith.constant dense<0.000000e+00> : vector<2x96xf32>
    %394 = tpu.matmul %393, %261, %cst_117 {dimension_numbers = #tpu.dot_dimension_numbers<[1], [0], [0], [1], [0, 0, 1, 1], [], []>} : vector<2x32xf32>, vector<32x96xf32>, vector<2x96xf32> -> vector<2x96xf32>
    %395 = arith.index_cast %c5_i32_116 : i32 to index
    %c0_118 = arith.constant 0 : index
    %c0_119 = arith.constant 0 : index
    %396 = vector.load %arg13[%395, %c0_118, %c0_119] : memref<8x2x96xf32, #tpu.memory_space<vmem>>, vector<1x2x96xf32>
    %397 = vector.shape_cast %396 : vector<1x2x96xf32> to vector<2x96xf32>
    %398 = vector.extract_strided_slice %397 {offsets = [0, 0], sizes = [2, 64], strides = [1, 1]} : vector<2x96xf32> to vector<2x64xf32>
    %399 = vector.extract_strided_slice %394 {offsets = [0, 0], sizes = [2, 64], strides = [1, 1]} : vector<2x96xf32> to vector<2x64xf32>
    %400 = arith.addf %398, %399 : vector<2x64xf32>
    %401 = arith.negf %400 : vector<2x64xf32>
    %402 = math.exp %401 : vector<2x64xf32>
    %cst_120 = arith.constant 1.000000e+00 : f32
    %403 = vector.broadcast %cst_120 : f32 to vector<2x64xf32>
    %404 = arith.addf %403, %402 : vector<2x64xf32>
    %405 = arith.divf %403, %404 : vector<2x64xf32>
    %406 = vector.extract_strided_slice %405 {offsets = [0, 0], sizes = [2, 32], strides = [1, 1]} : vector<2x64xf32> to vector<2x32xf32>
    %407 = vector.extract_strided_slice %405 {offsets = [0, 32], sizes = [2, 32], strides = [1, 1]} : vector<2x64xf32> to vector<2x32xf32>
    %408 = vector.extract_strided_slice %397 {offsets = [0, 64], sizes = [2, 32], strides = [1, 1]} : vector<2x96xf32> to vector<2x32xf32>
    %409 = vector.extract_strided_slice %394 {offsets = [0, 64], sizes = [2, 32], strides = [1, 1]} : vector<2x96xf32> to vector<2x32xf32>
    %410 = vector.broadcast %262 : vector<1x32xf32> to vector<2x32xf32>
    %411 = arith.addf %409, %410 : vector<2x32xf32>
    %412 = arith.mulf %406, %411 : vector<2x32xf32>
    %413 = arith.addf %408, %412 : vector<2x32xf32>
    %414 = math.tanh %413 : vector<2x32xf32>
    %cst_121 = arith.constant 1.000000e+00 : f32
    %415 = vector.broadcast %cst_121 : f32 to vector<2x32xf32>
    %416 = arith.subf %415, %407 : vector<2x32xf32>
    %417 = arith.mulf %416, %414 : vector<2x32xf32>
    %418 = arith.mulf %407, %393 : vector<2x32xf32>
    %419 = arith.addf %417, %418 : vector<2x32xf32>
    %c6_i32_122 = arith.constant 6 : i32
    %cst_123 = arith.constant dense<0.000000e+00> : vector<2x96xf32>
    %420 = tpu.matmul %419, %261, %cst_123 {dimension_numbers = #tpu.dot_dimension_numbers<[1], [0], [0], [1], [0, 0, 1, 1], [], []>} : vector<2x32xf32>, vector<32x96xf32>, vector<2x96xf32> -> vector<2x96xf32>
    %421 = arith.index_cast %c6_i32_122 : i32 to index
    %c0_124 = arith.constant 0 : index
    %c0_125 = arith.constant 0 : index
    %422 = vector.load %arg13[%421, %c0_124, %c0_125] : memref<8x2x96xf32, #tpu.memory_space<vmem>>, vector<1x2x96xf32>
    %423 = vector.shape_cast %422 : vector<1x2x96xf32> to vector<2x96xf32>
    %424 = vector.extract_strided_slice %423 {offsets = [0, 0], sizes = [2, 64], strides = [1, 1]} : vector<2x96xf32> to vector<2x64xf32>
    %425 = vector.extract_strided_slice %420 {offsets = [0, 0], sizes = [2, 64], strides = [1, 1]} : vector<2x96xf32> to vector<2x64xf32>
    %426 = arith.addf %424, %425 : vector<2x64xf32>
    %427 = arith.negf %426 : vector<2x64xf32>
    %428 = math.exp %427 : vector<2x64xf32>
    %cst_126 = arith.constant 1.000000e+00 : f32
    %429 = vector.broadcast %cst_126 : f32 to vector<2x64xf32>
    %430 = arith.addf %429, %428 : vector<2x64xf32>
    %431 = arith.divf %429, %430 : vector<2x64xf32>
    %432 = vector.extract_strided_slice %431 {offsets = [0, 0], sizes = [2, 32], strides = [1, 1]} : vector<2x64xf32> to vector<2x32xf32>
    %433 = vector.extract_strided_slice %431 {offsets = [0, 32], sizes = [2, 32], strides = [1, 1]} : vector<2x64xf32> to vector<2x32xf32>
    %434 = vector.extract_strided_slice %423 {offsets = [0, 64], sizes = [2, 32], strides = [1, 1]} : vector<2x96xf32> to vector<2x32xf32>
    %435 = vector.extract_strided_slice %420 {offsets = [0, 64], sizes = [2, 32], strides = [1, 1]} : vector<2x96xf32> to vector<2x32xf32>
    %436 = vector.broadcast %262 : vector<1x32xf32> to vector<2x32xf32>
    %437 = arith.addf %435, %436 : vector<2x32xf32>
    %438 = arith.mulf %432, %437 : vector<2x32xf32>
    %439 = arith.addf %434, %438 : vector<2x32xf32>
    %440 = math.tanh %439 : vector<2x32xf32>
    %cst_127 = arith.constant 1.000000e+00 : f32
    %441 = vector.broadcast %cst_127 : f32 to vector<2x32xf32>
    %442 = arith.subf %441, %433 : vector<2x32xf32>
    %443 = arith.mulf %442, %440 : vector<2x32xf32>
    %444 = arith.mulf %433, %419 : vector<2x32xf32>
    %445 = arith.addf %443, %444 : vector<2x32xf32>
    %c7_i32_128 = arith.constant 7 : i32
    %cst_129 = arith.constant dense<0.000000e+00> : vector<2x96xf32>
    %446 = tpu.matmul %445, %261, %cst_129 {dimension_numbers = #tpu.dot_dimension_numbers<[1], [0], [0], [1], [0, 0, 1, 1], [], []>} : vector<2x32xf32>, vector<32x96xf32>, vector<2x96xf32> -> vector<2x96xf32>
    %447 = arith.index_cast %c7_i32_128 : i32 to index
    %c0_130 = arith.constant 0 : index
    %c0_131 = arith.constant 0 : index
    %448 = vector.load %arg13[%447, %c0_130, %c0_131] : memref<8x2x96xf32, #tpu.memory_space<vmem>>, vector<1x2x96xf32>
    %449 = vector.shape_cast %448 : vector<1x2x96xf32> to vector<2x96xf32>
    %450 = vector.extract_strided_slice %449 {offsets = [0, 0], sizes = [2, 64], strides = [1, 1]} : vector<2x96xf32> to vector<2x64xf32>
    %451 = vector.extract_strided_slice %446 {offsets = [0, 0], sizes = [2, 64], strides = [1, 1]} : vector<2x96xf32> to vector<2x64xf32>
    %452 = arith.addf %450, %451 : vector<2x64xf32>
    %453 = arith.negf %452 : vector<2x64xf32>
    %454 = math.exp %453 : vector<2x64xf32>
    %cst_132 = arith.constant 1.000000e+00 : f32
    %455 = vector.broadcast %cst_132 : f32 to vector<2x64xf32>
    %456 = arith.addf %455, %454 : vector<2x64xf32>
    %457 = arith.divf %455, %456 : vector<2x64xf32>
    %458 = vector.extract_strided_slice %457 {offsets = [0, 0], sizes = [2, 32], strides = [1, 1]} : vector<2x64xf32> to vector<2x32xf32>
    %459 = vector.extract_strided_slice %457 {offsets = [0, 32], sizes = [2, 32], strides = [1, 1]} : vector<2x64xf32> to vector<2x32xf32>
    %460 = vector.extract_strided_slice %449 {offsets = [0, 64], sizes = [2, 32], strides = [1, 1]} : vector<2x96xf32> to vector<2x32xf32>
    %461 = vector.extract_strided_slice %446 {offsets = [0, 64], sizes = [2, 32], strides = [1, 1]} : vector<2x96xf32> to vector<2x32xf32>
    %462 = vector.broadcast %262 : vector<1x32xf32> to vector<2x32xf32>
    %463 = arith.addf %461, %462 : vector<2x32xf32>
    %464 = arith.mulf %458, %463 : vector<2x32xf32>
    %465 = arith.addf %460, %464 : vector<2x32xf32>
    %466 = math.tanh %465 : vector<2x32xf32>
    %cst_133 = arith.constant 1.000000e+00 : f32
    %467 = vector.broadcast %cst_133 : f32 to vector<2x32xf32>
    %468 = arith.subf %467, %459 : vector<2x32xf32>
    %469 = arith.mulf %468, %466 : vector<2x32xf32>
    %470 = arith.mulf %459, %445 : vector<2x32xf32>
    %471 = arith.addf %469, %470 : vector<2x32xf32>
    %c8_i32_134 = arith.constant 8 : i32
    %c0_135 = arith.constant 0 : index
    %c0_136 = arith.constant 0 : index
    %472 = vector.load %arg10[%c0_135, %c0_136] : memref<32x4xf32, #tpu.memory_space<vmem>>, vector<32x4xf32>
    %cst_137 = arith.constant dense<0.000000e+00> : vector<2x4xf32>
    %473 = tpu.matmul %471, %472, %cst_137 {dimension_numbers = #tpu.dot_dimension_numbers<[1], [0], [0], [1], [0, 0, 1, 1], [], []>} : vector<2x32xf32>, vector<32x4xf32>, vector<2x4xf32> -> vector<2x4xf32>
    %c0_138 = arith.constant 0 : index
    %c0_139 = arith.constant 0 : index
    %474 = vector.load %arg11[%c0_138, %c0_139] : memref<1x4xf32, #tpu.memory_space<vmem>>, vector<1x4xf32>
    %475 = vector.broadcast %474 : vector<1x4xf32> to vector<2x4xf32>
    %476 = arith.addf %473, %475 : vector<2x4xf32>
    %c0_140 = arith.constant 0 : index
    %c0_141 = arith.constant 0 : index
    %477 = vector.load %arg12[%c0_140, %c0_141] : memref<2x4xf32, #tpu.memory_space<vmem>>, vector<2x4xf32>
    tpu.vector_store %arg12[%c0_140, %c0_141], %476 {strides = array<i32>} : memref<2x4xf32, #tpu.memory_space<vmem>>, vector<2x4xf32>,
    return
  }
  func.func @transform_0(%arg0: i32) -> (i32, i32, i32) {
    %c0_i32 = arith.constant 0 : i32
    %c0_i32_0 = arith.constant 0 : i32
    %c0_i32_1 = arith.constant 0 : i32
    return %c0_i32, %arg0, %c0_i32_0 : i32, i32, i32
  }
  func.func @transform_1(%arg0: i32) -> (i32, i32) {
    %c0_i32 = arith.constant 0 : i32
    %c0_i32_0 = arith.constant 0 : i32
    %c0_i32_1 = arith.constant 0 : i32
    return %c0_i32, %c0_i32_0 : i32, i32
  }
  func.func @transform_2(%arg0: i32) -> (i32, i32) {
    %c0_i32 = arith.constant 0 : i32
    %c0_i32_0 = arith.constant 0 : i32
    %c0_i32_1 = arith.constant 0 : i32
    return %c0_i32, %c0_i32_0 : i32, i32
  }
  func.func @transform_3(%arg0: i32) -> (i32, i32) {
    %c0_i32 = arith.constant 0 : i32
    %c0_i32_0 = arith.constant 0 : i32
    %c0_i32_1 = arith.constant 0 : i32
    return %c0_i32, %c0_i32_0 : i32, i32
  }
  func.func @transform_4(%arg0: i32) -> (i32, i32) {
    %c0_i32 = arith.constant 0 : i32
    %c0_i32_0 = arith.constant 0 : i32
    %c0_i32_1 = arith.constant 0 : i32
    return %c0_i32, %c0_i32_0 : i32, i32
  }
  func.func @transform_5(%arg0: i32) -> (i32, i32) {
    %c0_i32 = arith.constant 0 : i32
    %c0_i32_0 = arith.constant 0 : i32
    %c0_i32_1 = arith.constant 0 : i32
    return %c0_i32, %c0_i32_0 : i32, i32
  }
  func.func @transform_6(%arg0: i32) -> (i32, i32) {
    %c0_i32 = arith.constant 0 : i32
    %c0_i32_0 = arith.constant 0 : i32
    %c0_i32_1 = arith.constant 0 : i32
    return %c0_i32, %c0_i32_0 : i32, i32
  }
  func.func @transform_7(%arg0: i32) -> (i32, i32) {
    %c0_i32 = arith.constant 0 : i32
    %c0_i32_0 = arith.constant 0 : i32
    %c0_i32_1 = arith.constant 0 : i32
    return %c0_i32, %c0_i32_0 : i32, i32
  }
  func.func @transform_8(%arg0: i32) -> (i32, i32) {
    %c0_i32 = arith.constant 0 : i32
    %c0_i32_0 = arith.constant 0 : i32
    %c0_i32_1 = arith.constant 0 : i32
    return %c0_i32, %c0_i32_0 : i32, i32
  }
  func.func @transform_9(%arg0: i32) -> (i32, i32) {
    %c0_i32 = arith.constant 0 : i32
    %c0_i32_0 = arith.constant 0 : i32
    %c0_i32_1 = arith.constant 0 : i32
    return %c0_i32, %c0_i32_0 : i32, i32
  }
  func.func @transform_10(%arg0: i32) -> (i32, i32) {
    %c0_i32 = arith.constant 0 : i32
    %c0_i32_0 = arith.constant 0 : i32
    %c0_i32_1 = arith.constant 0 : i32
    return %c0_i32, %c0_i32_0 : i32, i32
  }
  func.func @transform_11(%arg0: i32) -> (i32, i32) {
    %c0_i32 = arith.constant 0 : i32
    %c0_i32_0 = arith.constant 0 : i32
    return %arg0, %c0_i32 : i32, i32
  }
}

</mosaic_0001>

<llo_original>
// kernel: gru_forward.1
$region0: #{gru_forward.1}
  #allocation0 [shape = 'u32[]', space=smem, size = 0x4, offset = 0x4, fixed_abs, tag = 'smem constant byte address 0x4 - core index']
  #allocation1 [shape = 'u32[72,128]{1,0:T(1,128)}', space=vmem, size = 0x9000, scoped, tag = 'internal scratch']
  #allocation2 [shape = 'f32[8,2,96]{2,1,0:T(2,128)}', space=vmem, size = 0x2000, scoped, tag = 'scratch operand']
  #allocation3 [shape = 'f32[8,2,32]{2,1,0:T(2,128)}', space=vmem, size = 0x2000, scoped, tag = 'scratch operand']
  %s0 = inlined_call_operand.vmem [shape: f32[8,2,16], index: 0, kind: input, shape index: {}]
  %s1 = inlined_call_operand.hbm [shape: f32[16,96], index: 1, kind: input, shape index: {}]
  %s2 = inlined_call_operand.vmem [shape: f32[32,96], index: 2, kind: input, shape index: {}]
  %s3 = inlined_call_operand.vmem [shape: f32[1,96], index: 3, kind: input, shape index: {}]
  %s4 = inlined_call_operand.vmem [shape: f32[1,32], index: 4, kind: input, shape index: {}]
  %s5 = inlined_call_operand.vmem [shape: f32[32,96], index: 5, kind: input, shape index: {}]
  %s6 = inlined_call_operand.hbm [shape: f32[32,96], index: 6, kind: input, shape index: {}]
  %s7 = inlined_call_operand.vmem [shape: f32[1,96], index: 7, kind: input, shape index: {}]
  %s8 = inlined_call_operand.vmem [shape: f32[1,32], index: 8, kind: input, shape index: {}]
  %s9 = inlined_call_operand.vmem [shape: f32[32,4], index: 9, kind: input, shape index: {}]
  %s10 = inlined_call_operand.vmem [shape: f32[1,4], index: 10, kind: input, shape index: {}]
  %s11 = inlined_call_operand.hbm [shape: f32[2,4], index: 11, kind: output, shape index: {}]
  %s12 = sld [smem:[#allocation0]]
  $region62: #{gru_forward.1} parent=0
    _
  %s14 = ssub.s32 1, %s12
  %s15 = scalar_select 0, %s14, %s12
  $region1: #{gru_forward.1} parent=0
    #allocation4 [shape = 'u8[8192]{0}', space=vmem, size = 0x2000, scoped, tag = 'input window, operand 1, single buffered']
    #allocation5 [shape = 's32[1]{0}', space=sflag, size = 0x4, scoped, tag = 'scoped memory for gru_forward.1']
    #allocation6 [shape = 's32[1]{0}', space=sflag, size = 0x4, scoped, tag = 'scoped memory for gru_forward.1']
    #allocation7 [shape = 'u8[16384]{0}', space=vmem, size = 0x4000, scoped, tag = 'input window, operand 6, single buffered']
    #allocation8 [shape = 's32[1]{0}', space=sflag, size = 0x4, scoped, tag = 'scoped memory for gru_forward.1']
    #allocation9 [shape = 'u8[1024]{0}', space=vmem, size = 0x400, scoped, tag = 'output window, operand 0, single buffered']
    %16 = vsyncpa [#allocation5], 0
    %17 = vsyncpa [#allocation8], 0
    %18 = vsyncpa [#allocation6], 0
    // Predicated region
    $region2: #{gru_forward.1} parent=1 // pred_check
      _
    $region3: #{gru_forward.1} parent=1 // pred_check_branch
      %20 = sbr.rel (0) target = $region5
    $region4: #{gru_forward.1} parent=1 // pred_region
      _
    $region5: #{gru_forward.1} parent=1 // pred_fallthru
      _
    // Predicated region
    $region6: #{gru_forward.1} parent=1 // pred_check
      _
    $region7: #{gru_forward.1} parent=1 // pred_check_branch
      %22 = sbr.rel (0) target = $region9
    $region8: #{gru_forward.1} parent=1 // pred_region
      %24 = vsyncadd [#allocation5], 0
      %s25 = sshll.u32 %s1, 4
      %s26 = int_to_ptr.hbm [resolvable:$true] %s25
      %s27 = sshll.u32 [#allocation4], 4
      %s28 = int_to_ptr.vmem [resolvable:$true] %s27
      %33 = dma.hbm_to_vmem [thread:$0]  %s26, 256, %s28, [#allocation5], 128, 128, 8
    $region9: #{gru_forward.1} parent=1 // pred_fallthru
      _
    // Predicated region
    $region10: #{gru_forward.1} parent=1 // pred_check
      _
    $region11: #{gru_forward.1} parent=1 // pred_check_branch
      %35 = sbr.rel (0) target = $region13
    $region12: #{gru_forward.1} parent=1 // pred_region
      _
    $region13: #{gru_forward.1} parent=1 // pred_fallthru
      _
    // Predicated region
    $region14: #{gru_forward.1} parent=1 // pred_check
      _
    $region15: #{gru_forward.1} parent=1 // pred_check_branch
      %37 = sbr.rel (0) target = $region17
    $region16: #{gru_forward.1} parent=1 // pred_region
      _
    $region17: #{gru_forward.1} parent=1 // pred_fallthru
      _
    // Predicated region
    $region18: #{gru_forward.1} parent=1 // pred_check
      _
    $region19: #{gru_forward.1} parent=1 // pred_check_branch
      %39 = sbr.rel (0) target = $region21
    $region20: #{gru_forward.1} parent=1 // pred_region
      _
    $region21: #{gru_forward.1} parent=1 // pred_fallthru
      _
    // Predicated region
    $region22: #{gru_forward.1} parent=1 // pred_check
      _
    $region23: #{gru_forward.1} parent=1 // pred_check_branch
      %41 = sbr.rel (0) target = $region25
    $region24: #{gru_forward.1} parent=1 // pred_region
      _
    $region25: #{gru_forward.1} parent=1 // pred_fallthru
      _
    // Predicated region
    $region26: #{gru_forward.1} parent=1 // pred_check
      _
    $region27: #{gru_forward.1} parent=1 // pred_check_branch
      %43 = sbr.rel (0) target = $region29
    $region28: #{gru_forward.1} parent=1 // pred_region
      %45 = vsyncadd [#allocation8], 0
      %s46 = sshll.u32 %s6, 4
      %s47 = int_to_ptr.hbm [resolvable:$true] %s46
      %s48 = sshll.u32 [#allocation7], 4
      %s49 = int_to_ptr.vmem [resolvable:$true] %s48
      %54 = dma.hbm_to_vmem [thread:$0]  %s47, 512, %s49, [#allocation8], 128, 128, 8
    $region29: #{gru_forward.1} parent=1 // pred_fallthru
      _
    // Predicated region
    $region30: #{gru_forward.1} parent=1 // pred_check
      _
    $region31: #{gru_forward.1} parent=1 // pred_check_branch
      %56 = sbr.rel (0) target = $region33
    $region32: #{gru_forward.1} parent=1 // pred_region
      _
    $region33: #{gru_forward.1} parent=1 // pred_fallthru
      _
    // Predicated region
    $region34: #{gru_forward.1} parent=1 // pred_check
      _
    $region35: #{gru_forward.1} parent=1 // pred_check_branch
      %58 = sbr.rel (0) target = $region37
    $region36: #{gru_forward.1} parent=1 // pred_region
      _
    $region37: #{gru_forward.1} parent=1 // pred_fallthru
      _
    // Predicated region
    $region38: #{gru_forward.1} parent=1 // pred_check
      _
    $region39: #{gru_forward.1} parent=1 // pred_check_branch
      %60 = sbr.rel (0) target = $region41
    $region40: #{gru_forward.1} parent=1 // pred_region
      _
    $region41: #{gru_forward.1} parent=1 // pred_fallthru
      _
    // Predicated region
    $region42: #{gru_forward.1} parent=1 // pred_check
      _
    $region43: #{gru_forward.1} parent=1 // pred_check_branch
      %62 = sbr.rel (0) target = $region45
    $region44: #{gru_forward.1} parent=1 // pred_region
      _
    $region45: #{gru_forward.1} parent=1 // pred_fallthru
      _
    // Predicated region
    $region46: #{gru_forward.1} parent=1 // pred_check
      _
    $region47: #{gru_forward.1} parent=1 // pred_check_branch
      %64 = sbr.rel (0) target = $region49
    $region48: #{gru_forward.1} parent=1 // pred_region
      %66 = dma.done [#allocation5], 256
    $region49: #{gru_forward.1} parent=1 // pred_fallthru
      _
    // Predicated region
    $region50: #{gru_forward.1} parent=1 // pred_check
      _
    $region51: #{gru_forward.1} parent=1 // pred_check_branch
      %68 = sbr.rel (0) target = $region53
    $region52: #{gru_forward.1} parent=1 // pred_region
      %70 = dma.done [#allocation8], 512
    $region53: #{gru_forward.1} parent=1 // pred_fallthru
      _
    %v71 = vld [vmem:[%s0] sm:$0x3]
    %v72 = vld [vmem:[%s0 + $0x2] sm:$0x3]
    %v73 = vld [vmem:[%s0 + $0x4] sm:$0x3]
    %v74 = vld [vmem:[%s0 + $0x6] sm:$0x3]
    %v75 = vld [vmem:[%s0 + $0x8] sm:$0x3]
    %v76 = vld [vmem:[%s0 + $0xa] sm:$0x3]
    %v77 = vld [vmem:[%s0 + $0xc] sm:$0x3]
    %v78 = vld [vmem:[%s0 + $0xe] sm:$0x3]
    %v79 = vld [vmem:[#allocation4] sm:$0xff]
    %v80 = vld [vmem:[#allocation4 + $0x8] sm:$0xff]
    %v81 = vld [vmem:[%s3] sm:$0x1]
    %v83 = vperm.slane %v81, 0
    %93 = vst [vmem:[#allocation1] ss:$4 sm:$0xff] %v71
    %s94 = scalar_lea.vmem [#allocation1], 1
    %95 = vst [vmem:[%s94] ss:$4 sm:$0xff] %v72
    %s96 = scalar_lea.vmem [#allocation1], 2
    %97 = vst [vmem:[%s96] ss:$4 sm:$0xff] %v73
    %s98 = scalar_lea.vmem [#allocation1], 3
    %99 = vst [vmem:[%s98] ss:$4 sm:$0xff] %v74
    %s100 = scalar_lea.vmem [#allocation1], 32
    %101 = vst [vmem:[%s100] ss:$4 sm:$0xff] %v75
    %s102 = scalar_lea.vmem [#allocation1], 33
    %103 = vst [vmem:[%s102] ss:$4 sm:$0xff] %v76
    %s104 = scalar_lea.vmem [#allocation1], 34
    %105 = vst [vmem:[%s104] ss:$4 sm:$0xff] %v77
    %s106 = scalar_lea.vmem [#allocation1], 35
    %107 = vst [vmem:[%s106] ss:$4 sm:$0xff] %v78
    %v108 = vld.sshfl [vmem:[#allocation1] sm:$0xff pattern:$0x73625140]
    %v109 = vld.sshfl [vmem:[#allocation1 + $0x20] sm:$0xff pattern:$0x73625140]
    %vm110 = vcmask 130048
    %v111 = vsel %vm110, %v108, 0
    %v113 = vsel %vm110, %v109, 0
    %115 = vmatpush.msra.mxu0 0.0
    %116 = vmatpush.msra.mxu0 0.0
    %117 = vmatpush.msra.mxu0 0.0
    %118 = vmatpush.msra.mxu0 0.0
    %119 = vmatpush.msra.mxu0 0.0
    %120 = vmatpush.msra.mxu0 0.0
    %121 = vmatpush.msra.mxu0 0.0
    %122 = vmatpush.msra.mxu0 0.0
    %123 = vmatpush.msra.mxu0 0.0
    %124 = vmatpush.msra.mxu0 0.0
    %125 = vmatpush.msra.mxu0 0.0
    %126 = vmatpush.msra.mxu0 0.0
    %127 = vmatpush.msra.mxu0 0.0
    %128 = vmatpush.msra.mxu0 0.0
    %129 = vmatpush.msra.mxu0 %v80
    %130 = vmatpush.msra.mxu0 %v79
    %131 = vmatmul.f32.gmra.mxu0 %v111
    %v132 = vpop.f32.mrf.mxu0
    %v133 = vadd.f32 %v83, %v132
    %134 = vmatmul.f32.gmra.mxu0 %v113
    %v135 = vpop.f32.mrf.mxu0
    %v136 = vadd.f32 %v83, %v135
    %137 = vdwg.mxu0
    %v140 = vrot.slane %v133, 2
    %v141 = vrot.slane %v133, 4
    %v142 = vrot.slane %v133, 6
    %v143 = vrot.slane %v136, 2
    %v144 = vrot.slane %v136, 4
    %v145 = vrot.slane %v136, 6
    %vm152 = vcmask 779264
    %153 = vst.msk [vmem:[#allocation2] sm:$0x3] %vm152, %v133
    %154 = vst.msk [vmem:[#allocation2 + $0x2] sm:$0x3] %vm152, %v140
    %155 = vst.msk [vmem:[#allocation2 + $0x4] sm:$0x3] %vm152, %v141
    %156 = vst.msk [vmem:[#allocation2 + $0x6] sm:$0x3] %vm152, %v142
    %157 = vst.msk [vmem:[#allocation2 + $0x8] sm:$0x3] %vm152, %v136
    %158 = vst.msk [vmem:[#allocation2 + $0xa] sm:$0x3] %vm152, %v143
    %159 = vst.msk [vmem:[#allocation2 + $0xc] sm:$0x3] %vm152, %v144
    %160 = vst.msk [vmem:[#allocation2 + $0xe] sm:$0x3] %vm152, %v145
    %v161 = vld [vmem:[%s2] sm:$0xff]
    %v162 = vld [vmem:[%s2 + $0x8] sm:$0xff]
    %v163 = vld [vmem:[%s2 + $0x10] sm:$0xff]
    %v164 = vld [vmem:[%s2 + $0x18] sm:$0xff]
    %v165 = vld [vmem:[%s4] sm:$0x1]
    %vm166 = vcmask 261120
    %v168 = vsel %vm166, 0.0, 0
    %170 = vmatpush.msra.mxu0 0.0
    %171 = vmatpush.msra.mxu0 0.0
    %172 = vmatpush.msra.mxu0 0.0
    %173 = vmatpush.msra.mxu0 0.0
    %174 = vmatpush.msra.mxu0 0.0
    %175 = vmatpush.msra.mxu0 0.0
    %176 = vmatpush.msra.mxu0 0.0
    %177 = vmatpush.msra.mxu0 0.0
    %178 = vmatpush.msra.mxu0 0.0
    %179 = vmatpush.msra.mxu0 0.0
    %180 = vmatpush.msra.mxu0 0.0
    %181 = vmatpush.msra.mxu0 0.0
    %182 = vmatpush.msra.mxu0 %v164
    %183 = vmatpush.msra.mxu0 %v163
    %184 = vmatpush.msra.mxu0 %v162
    %185 = vmatpush.msra.mxu0 %v161
    %186 = vmatmul.f32.gmra.mxu0 %v168
    %v187 = vpop.f32.mrf.mxu0
    %v188 = vadd.f32 0.0, %v187
    %189 = vdwg.mxu0
    %v190 = vld [vmem:[#allocation2] sm:$0x3]
    %v191 = vadd.f32 %v190, %v188
    %v192 = vxor.u32 %v191, 2147483648
    %v193 = vmul.f32 %v192, 1.442695
    %v194 = vpow.pop %v193
    %v195 = vadd.f32 %v194, 1.0
    %v196 = vrcp.pop %v195
    %v197 = vmul.f32 %v195, %v196
    %v198 = vsub.f32 1.0, %v197
    %v199 = vmul.f32 %v196, %v198
    %v200 = vadd.f32 %v196, %v199
    %vm201 = vweird.f32 %v195
    %vm202 = vweird.f32 %v196
    %vm203 = vmor %vm201, %vm202
    %v204 = vsel %vm203, %v196, %v200
    %v205 = vand.u32 2147483647, %v195
    %vm206 = vcmp.eq.f32.partialorder %v205, 8.507059e+37
    %v207 = vand.u32 %v195, 2147483648
    %v208 = vor.u32 1.1754944e-38, %v207
    %v209 = vsel %vm206, %v208, %v204
    %v210 = vmul.f32 1.0, %v209
    %v212 = vperm.slane %v165, 0
    %213 = vrot.lane.b32.xlu0 %v212, 64
    %v214 = vpop.permute.xlu0 %213
    %v216 = vadd.f32 %v188, %v214
    %218 = vrot.lane.b32.xlu0 %v216, 64
    %v219 = vpop.permute.xlu0 %218
    %v221 = vmul.f32 %v210, %v219
    %223 = vrot.lane.b32.xlu0 %v221, 64
    %v224 = vpop.permute.xlu0 %223
    %v226 = vadd.f32 %v190, %v224
    %v227 = vtanh.pop %v226
    %v228 = vsub.f32 1.0, %v210
    %230 = vrot.lane.b32.xlu0 %v227, 96
    %v231 = vpop.permute.xlu0 %230
    %v233 = vmul.f32 %v228, %v231
    %v234 = vmul.f32 %v210, 0.0
    %v235 = vadd.f32 %v233, %v234
    %237 = vrot.lane.b32.xlu0 %v235, 96
    %v238 = vpop.permute.xlu0 %237
    %vm240 = vcmask 254976
    %241 = vst.msk [vmem:[#allocation3] sm:$0x3] %vm240, %v238
    %v242 = vsel %vm166, %v238, 0
    %244 = vmatpush.msra.mxu0 0.0
    %245 = vmatpush.msra.mxu0 0.0
    %246 = vmatpush.msra.mxu0 0.0
    %247 = vmatpush.msra.mxu0 0.0
    %248 = vmatpush.msra.mxu0 0.0
    %249 = vmatpush.msra.mxu0 0.0
    %250 = vmatpush.msra.mxu0 0.0
    %251 = vmatpush.msra.mxu0 0.0
    %252 = vmatpush.msra.mxu0 0.0
    %253 = vmatpush.msra.mxu0 0.0
    %254 = vmatpush.msra.mxu0 0.0
    %255 = vmatpush.msra.mxu0 0.0
    %256 = vmatpush.msra.mxu0 %v164
    %257 = vmatpush.msra.mxu0 %v163
    %258 = vmatpush.msra.mxu0 %v162
    %259 = vmatpush.msra.mxu0 %v161
    %260 = vmatmul.f32.gmra.mxu0 %v242
    %v261 = vpop.f32.mrf.mxu0
    %v262 = vadd.f32 0.0, %v261
    %263 = vdwg.mxu0
    %s264 = scalar_lea.vmem [#allocation2], 2
    %v265 = vld [vmem:[%s264] sm:$0x3]
    %v266 = vadd.f32 %v265, %v262
    %v267 = vxor.u32 %v266, 2147483648
    %v268 = vmul.f32 %v267, 1.442695
    %v269 = vpow.pop %v268
    %v270 = vadd.f32 %v269, 1.0
    %v271 = vrcp.pop %v270
    %v272 = vmul.f32 %v270, %v271
    %v273 = vsub.f32 1.0, %v272
    %v274 = vmul.f32 %v271, %v273
    %v275 = vadd.f32 %v271, %v274
    %vm276 = vweird.f32 %v270
    %vm277 = vweird.f32 %v271
    %vm278 = vmor %vm276, %vm277
    %v279 = vsel %vm278, %v271, %v275
    %v280 = vand.u32 2147483647, %v270
    %vm281 = vcmp.eq.f32.partialorder %v280, 8.507059e+37
    %v282 = vand.u32 %v270, 2147483648
    %v283 = vor.u32 1.1754944e-38, %v282
    %v284 = vsel %vm281, %v283, %v279
    %v285 = vmul.f32 1.0, %v284
    %v286 = vadd.f32 %v262, %v214
    %288 = vrot.lane.b32.xlu0 %v286, 64
    %v289 = vpop.permute.xlu0 %288
    %v291 = vmul.f32 %v285, %v289
    %293 = vrot.lane.b32.xlu0 %v291, 64
    %v294 = vpop.permute.xlu0 %293
    %v296 = vadd.f32 %v265, %v294
    %v297 = vtanh.pop %v296
    %v298 = vsub.f32 1.0, %v285
    %300 = vrot.lane.b32.xlu0 %v297, 96
    %v301 = vpop.permute.xlu0 %300
    %v303 = vmul.f32 %v298, %v301
    %v304 = vmul.f32 %v285, %v235
    %v305 = vadd.f32 %v303, %v304
    %307 = vrot.lane.b32.xlu0 %v305, 96
    %v308 = vpop.permute.xlu0 %307
    %s310 = scalar_lea.vmem [#allocation3], 2
    %311 = vst.msk [vmem:[%s310] sm:$0x3] %vm240, %v308
    %v312 = vsel %vm166, %v308, 0
    %314 = vmatpush.msra.mxu0 0.0
    %315 = vmatpush.msra.mxu0 0.0
    %316 = vmatpush.msra.mxu0 0.0
    %317 = vmatpush.msra.mxu0 0.0
    %318 = vmatpush.msra.mxu0 0.0
    %319 = vmatpush.msra.mxu0 0.0
    %320 = vmatpush.msra.mxu0 0.0
    %321 = vmatpush.msra.mxu0 0.0
    %322 = vmatpush.msra.mxu0 0.0
    %323 = vmatpush.msra.mxu0 0.0
    %324 = vmatpush.msra.mxu0 0.0
    %325 = vmatpush.msra.mxu0 0.0
    %326 = vmatpush.msra.mxu0 %v164
    %327 = vmatpush.msra.mxu0 %v163
    %328 = vmatpush.msra.mxu0 %v162
    %329 = vmatpush.msra.mxu0 %v161
    %330 = vmatmul.f32.gmra.mxu0 %v312
    %v331 = vpop.f32.mrf.mxu0
    %v332 = vadd.f32 0.0, %v331
    %333 = vdwg.mxu0
    %s334 = scalar_lea.vmem [#allocation2], 4
    %v335 = vld [vmem:[%s334] sm:$0x3]
    %v336 = vadd.f32 %v335, %v332
    %v337 = vxor.u32 %v336, 2147483648
    %v338 = vmul.f32 %v337, 1.442695
    %v339 = vpow.pop %v338
    %v340 = vadd.f32 %v339, 1.0
    %v341 = vrcp.pop %v340
    %v342 = vmul.f32 %v340, %v341
    %v343 = vsub.f32 1.0, %v342
    %v344 = vmul.f32 %v341, %v343
    %v345 = vadd.f32 %v341, %v344
    %vm346 = vweird.f32 %v340
    %vm347 = vweird.f32 %v341
    %vm348 = vmor %vm346, %vm347
    %v349 = vsel %vm348, %v341, %v345
    %v350 = vand.u32 2147483647, %v340
    %vm351 = vcmp.eq.f32.partialorder %v350, 8.507059e+37
    %v352 = vand.u32 %v340, 2147483648
    %v353 = vor.u32 1.1754944e-38, %v352
    %v354 = vsel %vm351, %v353, %v349
    %v355 = vmul.f32 1.0, %v354
    %v356 = vadd.f32 %v332, %v214
    %358 = vrot.lane.b32.xlu0 %v356, 64
    %v359 = vpop.permute.xlu0 %358
    %v361 = vmul.f32 %v355, %v359
    %363 = vrot.lane.b32.xlu0 %v361, 64
    %v364 = vpop.permute.xlu0 %363
    %v366 = vadd.f32 %v335, %v364
    %v367 = vtanh.pop %v366
    %v368 = vsub.f32 1.0, %v355
    %370 = vrot.lane.b32.xlu0 %v367, 96
    %v371 = vpop.permute.xlu0 %370
    %v373 = vmul.f32 %v368, %v371
    %v374 = vmul.f32 %v355, %v305
    %v375 = vadd.f32 %v373, %v374
    %377 = vrot.lane.b32.xlu0 %v375, 96
    %v378 = vpop.permute.xlu0 %377
    %s380 = scalar_lea.vmem [#allocation3], 4
    %381 = vst.msk [vmem:[%s380] sm:$0x3] %vm240, %v378
    %v382 = vsel %vm166, %v378, 0
    %384 = vmatpush.msra.mxu0 0.0
    %385 = vmatpush.msra.mxu0 0.0
    %386 = vmatpush.msra.mxu0 0.0
    %387 = vmatpush.msra.mxu0 0.0
    %388 = vmatpush.msra.mxu0 0.0
    %389 = vmatpush.msra.mxu0 0.0
    %390 = vmatpush.msra.mxu0 0.0
    %391 = vmatpush.msra.mxu0 0.0
    %392 = vmatpush.msra.mxu0 0.0
    %393 = vmatpush.msra.mxu0 0.0
    %394 = vmatpush.msra.mxu0 0.0
    %395 = vmatpush.msra.mxu0 0.0
    %396 = vmatpush.msra.mxu0 %v164
    %397 = vmatpush.msra.mxu0 %v163
    %398 = vmatpush.msra.mxu0 %v162
    %399 = vmatpush.msra.mxu0 %v161
    %400 = vmatmul.f32.gmra.mxu0 %v382
    %v401 = vpop.f32.mrf.mxu0
    %v402 = vadd.f32 0.0, %v401
    %403 = vdwg.mxu0
    %s404 = scalar_lea.vmem [#allocation2], 6
    %v405 = vld [vmem:[%s404] sm:$0x3]
    %v406 = vadd.f32 %v405, %v402
    %v407 = vxor.u32 %v406, 2147483648
    %v408 = vmul.f32 %v407, 1.442695
    %v409 = vpow.pop %v408
    %v410 = vadd.f32 %v409, 1.0
    %v411 = vrcp.pop %v410
    %v412 = vmul.f32 %v410, %v411
    %v413 = vsub.f32 1.0, %v412
    %v414 = vmul.f32 %v411, %v413
    %v415 = vadd.f32 %v411, %v414
    %vm416 = vweird.f32 %v410
    %vm417 = vweird.f32 %v411
    %vm418 = vmor %vm416, %vm417
    %v419 = vsel %vm418, %v411, %v415
    %v420 = vand.u32 2147483647, %v410
    %vm421 = vcmp.eq.f32.partialorder %v420, 8.507059e+37
    %v422 = vand.u32 %v410, 2147483648
    %v423 = vor.u32 1.1754944e-38, %v422
    %v424 = vsel %vm421, %v423, %v419
    %v425 = vmul.f32 1.0, %v424
    %v426 = vadd.f32 %v402, %v214
    %428 = vrot.lane.b32.xlu0 %v426, 64
    %v429 = vpop.permute.xlu0 %428
    %v431 = vmul.f32 %v425, %v429
    %433 = vrot.lane.b32.xlu0 %v431, 64
    %v434 = vpop.permute.xlu0 %433
    %v436 = vadd.f32 %v405, %v434
    %v437 = vtanh.pop %v436
    %v438 = vsub.f32 1.0, %v425
    %440 = vrot.lane.b32.xlu0 %v437, 96
    %v441 = vpop.permute.xlu0 %440
    %v443 = vmul.f32 %v438, %v441
    %v444 = vmul.f32 %v425, %v375
    %v445 = vadd.f32 %v443, %v444
    %447 = vrot.lane.b32.xlu0 %v445, 96
    %v448 = vpop.permute.xlu0 %447
    %s450 = scalar_lea.vmem [#allocation3], 6
    %451 = vst.msk [vmem:[%s450] sm:$0x3] %vm240, %v448
    %v452 = vsel %vm166, %v448, 0
    %454 = vmatpush.msra.mxu0 0.0
    %455 = vmatpush.msra.mxu0 0.0
    %456 = vmatpush.msra.mxu0 0.0
    %457 = vmatpush.msra.mxu0 0.0
    %458 = vmatpush.msra.mxu0 0.0
    %459 = vmatpush.msra.mxu0 0.0
    %460 = vmatpush.msra.mxu0 0.0
    %461 = vmatpush.msra.mxu0 0.0
    %462 = vmatpush.msra.mxu0 0.0
    %463 = vmatpush.msra.mxu0 0.0
    %464 = vmatpush.msra.mxu0 0.0
    %465 = vmatpush.msra.mxu0 0.0
    %466 = vmatpush.msra.mxu0 %v164
    %467 = vmatpush.msra.mxu0 %v163
    %468 = vmatpush.msra.mxu0 %v162
    %469 = vmatpush.msra.mxu0 %v161
    %470 = vmatmul.f32.gmra.mxu0 %v452
    %v471 = vpop.f32.mrf.mxu0
    %v472 = vadd.f32 0.0, %v471
    %473 = vdwg.mxu0
    %s474 = scalar_lea.vmem [#allocation2], 8
    %v475 = vld [vmem:[%s474] sm:$0x3]
    %v476 = vadd.f32 %v475, %v472
    %v477 = vxor.u32 %v476, 2147483648
    %v478 = vmul.f32 %v477, 1.442695
    %v479 = vpow.pop %v478
    %v480 = vadd.f32 %v479, 1.0
    %v481 = vrcp.pop %v480
    %v482 = vmul.f32 %v480, %v481
    %v483 = vsub.f32 1.0, %v482
    %v484 = vmul.f32 %v481, %v483
    %v485 = vadd.f32 %v481, %v484
    %vm486 = vweird.f32 %v480
    %vm487 = vweird.f32 %v481
    %vm488 = vmor %vm486, %vm487
    %v489 = vsel %vm488, %v481, %v485
    %v490 = vand.u32 2147483647, %v480
    %vm491 = vcmp.eq.f32.partialorder %v490, 8.507059e+37
    %v492 = vand.u32 %v480, 2147483648
    %v493 = vor.u32 1.1754944e-38, %v492
    %v494 = vsel %vm491, %v493, %v489
    %v495 = vmul.f32 1.0, %v494
    %v496 = vadd.f32 %v472, %v214
    %498 = vrot.lane.b32.xlu0 %v496, 64
    %v499 = vpop.permute.xlu0 %498
    %v501 = vmul.f32 %v495, %v499
    %503 = vrot.lane.b32.xlu0 %v501, 64
    %v504 = vpop.permute.xlu0 %503
    %v506 = vadd.f32 %v475, %v504
    %v507 = vtanh.pop %v506
    %v508 = vsub.f32 1.0, %v495
    %510 = vrot.lane.b32.xlu0 %v507, 96
    %v511 = vpop.permute.xlu0 %510
    %v513 = vmul.f32 %v508, %v511
    %v514 = vmul.f32 %v495, %v445
    %v515 = vadd.f32 %v513, %v514
    %517 = vrot.lane.b32.xlu0 %v515, 96
    %v518 = vpop.permute.xlu0 %517
    %s520 = scalar_lea.vmem [#allocation3], 8
    %521 = vst.msk [vmem:[%s520] sm:$0x3] %vm240, %v518
    %v522 = vsel %vm166, %v518, 0
    %524 = vmatpush.msra.mxu0 0.0
    %525 = vmatpush.msra.mxu0 0.0
    %526 = vmatpush.msra.mxu0 0.0
    %527 = vmatpush.msra.mxu0 0.0
    %528 = vmatpush.msra.mxu0 0.0
    %529 = vmatpush.msra.mxu0 0.0
    %530 = vmatpush.msra.mxu0 0.0
    %531 = vmatpush.msra.mxu0 0.0
    %532 = vmatpush.msra.mxu0 0.0
    %533 = vmatpush.msra.mxu0 0.0
    %534 = vmatpush.msra.mxu0 0.0
    %535 = vmatpush.msra.mxu0 0.0
    %536 = vmatpush.msra.mxu0 %v164
    %537 = vmatpush.msra.mxu0 %v163
    %538 = vmatpush.msra.mxu0 %v162
    %539 = vmatpush.msra.mxu0 %v161
    %540 = vmatmul.f32.gmra.mxu0 %v522
    %v541 = vpop.f32.mrf.mxu0
    %v542 = vadd.f32 0.0, %v541
    %543 = vdwg.mxu0
    %s544 = scalar_lea.vmem [#allocation2], 10
    %v545 = vld [vmem:[%s544] sm:$0x3]
    %v546 = vadd.f32 %v545, %v542
    %v547 = vxor.u32 %v546, 2147483648
    %v548 = vmul.f32 %v547, 1.442695
    %v549 = vpow.pop %v548
    %v550 = vadd.f32 %v549, 1.0
    %v551 = vrcp.pop %v550
    %v552 = vmul.f32 %v550, %v551
    %v553 = vsub.f32 1.0, %v552
    %v554 = vmul.f32 %v551, %v553
    %v555 = vadd.f32 %v551, %v554
    %vm556 = vweird.f32 %v550
    %vm557 = vweird.f32 %v551
    %vm558 = vmor %vm556, %vm557
    %v559 = vsel %vm558, %v551, %v555
    %v560 = vand.u32 2147483647, %v550
    %vm561 = vcmp.eq.f32.partialorder %v560, 8.507059e+37
    %v562 = vand.u32 %v550, 2147483648
    %v563 = vor.u32 1.1754944e-38, %v562
    %v564 = vsel %vm561, %v563, %v559
    %v565 = vmul.f32 1.0, %v564
    %v566 = vadd.f32 %v542, %v214
    %568 = vrot.lane.b32.xlu0 %v566, 64
    %v569 = vpop.permute.xlu0 %568
    %v571 = vmul.f32 %v565, %v569
    %573 = vrot.lane.b32.xlu0 %v571, 64
    %v574 = vpop.permute.xlu0 %573
    %v576 = vadd.f32 %v545, %v574
    %v577 = vtanh.pop %v576
    %v578 = vsub.f32 1.0, %v565
    %580 = vrot.lane.b32.xlu0 %v577, 96
    %v581 = vpop.permute.xlu0 %580
    %v583 = vmul.f32 %v578, %v581
    %v584 = vmul.f32 %v565, %v515
    %v585 = vadd.f32 %v583, %v584
    %587 = vrot.lane.b32.xlu0 %v585, 96
    %v588 = vpop.permute.xlu0 %587
    %s590 = scalar_lea.vmem [#allocation3], 10
    %591 = vst.msk [vmem:[%s590] sm:$0x3] %vm240, %v588
    %v592 = vsel %vm166, %v588, 0
    %594 = vmatpush.msra.mxu0 0.0
    %595 = vmatpush.msra.mxu0 0.0
    %596 = vmatpush.msra.mxu0 0.0
    %597 = vmatpush.msra.mxu0 0.0
    %598 = vmatpush.msra.mxu0 0.0
    %599 = vmatpush.msra.mxu0 0.0
    %600 = vmatpush.msra.mxu0 0.0
    %601 = vmatpush.msra.mxu0 0.0
    %602 = vmatpush.msra.mxu0 0.0
    %603 = vmatpush.msra.mxu0 0.0
    %604 = vmatpush.msra.mxu0 0.0
    %605 = vmatpush.msra.mxu0 0.0
    %606 = vmatpush.msra.mxu0 %v164
    %607 = vmatpush.msra.mxu0 %v163
    %608 = vmatpush.msra.mxu0 %v162
    %609 = vmatpush.msra.mxu0 %v161
    %610 = vmatmul.f32.gmra.mxu0 %v592
    %v611 = vpop.f32.mrf.mxu0
    %v612 = vadd.f32 0.0, %v611
    %613 = vdwg.mxu0
    %s614 = scalar_lea.vmem [#allocation2], 12
    %v615 = vld [vmem:[%s614] sm:$0x3]
    %v616 = vadd.f32 %v615, %v612
    %v617 = vxor.u32 %v616, 2147483648
    %v618 = vmul.f32 %v617, 1.442695
    %v619 = vpow.pop %v618
    %v620 = vadd.f32 %v619, 1.0
    %v621 = vrcp.pop %v620
    %v622 = vmul.f32 %v620, %v621
    %v623 = vsub.f32 1.0, %v622
    %v624 = vmul.f32 %v621, %v623
    %v625 = vadd.f32 %v621, %v624
    %vm626 = vweird.f32 %v620
    %vm627 = vweird.f32 %v621
    %vm628 = vmor %vm626, %vm627
    %v629 = vsel %vm628, %v621, %v625
    %v630 = vand.u32 2147483647, %v620
    %vm631 = vcmp.eq.f32.partialorder %v630, 8.507059e+37
    %v632 = vand.u32 %v620, 2147483648
    %v633 = vor.u32 1.1754944e-38, %v632
    %v634 = vsel %vm631, %v633, %v629
    %v635 = vmul.f32 1.0, %v634
    %v636 = vadd.f32 %v612, %v214
    %638 = vrot.lane.b32.xlu0 %v636, 64
    %v639 = vpop.permute.xlu0 %638
    %v641 = vmul.f32 %v635, %v639
    %643 = vrot.lane.b32.xlu0 %v641, 64
    %v644 = vpop.permute.xlu0 %643
    %v646 = vadd.f32 %v615, %v644
    %v647 = vtanh.pop %v646
    %v648 = vsub.f32 1.0, %v635
    %650 = vrot.lane.b32.xlu0 %v647, 96
    %v651 = vpop.permute.xlu0 %650
    %v653 = vmul.f32 %v648, %v651
    %v654 = vmul.f32 %v635, %v585
    %v655 = vadd.f32 %v653, %v654
    %657 = vrot.lane.b32.xlu0 %v655, 96
    %v658 = vpop.permute.xlu0 %657
    %s660 = scalar_lea.vmem [#allocation3], 12
    %661 = vst.msk [vmem:[%s660] sm:$0x3] %vm240, %v658
    %v662 = vsel %vm166, %v658, 0
    %664 = vmatpush.msra.mxu0 0.0
    %665 = vmatpush.msra.mxu0 0.0
    %666 = vmatpush.msra.mxu0 0.0
    %667 = vmatpush.msra.mxu0 0.0
    %668 = vmatpush.msra.mxu0 0.0
    %669 = vmatpush.msra.mxu0 0.0
    %670 = vmatpush.msra.mxu0 0.0
    %671 = vmatpush.msra.mxu0 0.0
    %672 = vmatpush.msra.mxu0 0.0
    %673 = vmatpush.msra.mxu0 0.0
    %674 = vmatpush.msra.mxu0 0.0
    %675 = vmatpush.msra.mxu0 0.0
    %676 = vmatpush.msra.mxu0 %v164
    %677 = vmatpush.msra.mxu0 %v163
    %678 = vmatpush.msra.mxu0 %v162
    %679 = vmatpush.msra.mxu0 %v161
    %680 = vmatmul.f32.gmra.mxu0 %v662
    %v681 = vpop.f32.mrf.mxu0
    %v682 = vadd.f32 0.0, %v681
    %683 = vdwg.mxu0
    %s684 = scalar_lea.vmem [#allocation2], 14
    %v685 = vld [vmem:[%s684] sm:$0x3]
    %v686 = vadd.f32 %v685, %v682
    %v687 = vxor.u32 %v686, 2147483648
    %v688 = vmul.f32 %v687, 1.442695
    %v689 = vpow.pop %v688
    %v690 = vadd.f32 %v689, 1.0
    %v691 = vrcp.pop %v690
    %v692 = vmul.f32 %v690, %v691
    %v693 = vsub.f32 1.0, %v692
    %v694 = vmul.f32 %v691, %v693
    %v695 = vadd.f32 %v691, %v694
    %vm696 = vweird.f32 %v690
    %vm697 = vweird.f32 %v691
    %vm698 = vmor %vm696, %vm697
    %v699 = vsel %vm698, %v691, %v695
    %v700 = vand.u32 2147483647, %v690
    %vm701 = vcmp.eq.f32.partialorder %v700, 8.507059e+37
    %v702 = vand.u32 %v690, 2147483648
    %v703 = vor.u32 1.1754944e-38, %v702
    %v704 = vsel %vm701, %v703, %v699
    %v705 = vmul.f32 1.0, %v704
    %v706 = vadd.f32 %v682, %v214
    %708 = vrot.lane.b32.xlu0 %v706, 64
    %v709 = vpop.permute.xlu0 %708
    %v711 = vmul.f32 %v705, %v709
    %713 = vrot.lane.b32.xlu0 %v711, 64
    %v714 = vpop.permute.xlu0 %713
    %v716 = vadd.f32 %v685, %v714
    %v717 = vtanh.pop %v716
    %v718 = vsub.f32 1.0, %v705
    %720 = vrot.lane.b32.xlu0 %v717, 96
    %v721 = vpop.permute.xlu0 %720
    %v723 = vmul.f32 %v718, %v721
    %v724 = vmul.f32 %v705, %v655
    %v725 = vadd.f32 %v723, %v724
    %727 = vrot.lane.b32.xlu0 %v725, 96
    %v728 = vpop.permute.xlu0 %727
    %s730 = scalar_lea.vmem [#allocation3], 14
    %731 = vst.msk [vmem:[%s730] sm:$0x3] %vm240, %v728
    %v732 = vld [vmem:[#allocation3] sm:$0x3]
    %v733 = vld [vmem:[#allocation3 + $0x2] sm:$0x3]
    %v734 = vld [vmem:[#allocation3 + $0x4] sm:$0x3]
    %v735 = vld [vmem:[#allocation3 + $0x6] sm:$0x3]
    %v736 = vld [vmem:[#allocation3 + $0x8] sm:$0x3]
    %v737 = vld [vmem:[#allocation3 + $0xa] sm:$0x3]
    %v738 = vld [vmem:[#allocation3 + $0xc] sm:$0x3]
    %v739 = vld [vmem:[#allocation3 + $0xe] sm:$0x3]
    %v740 = vld [vmem:[%s5] sm:$0xff]
    %v741 = vld [vmem:[%s5 + $0x8] sm:$0xff]
    %v742 = vld [vmem:[%s5 + $0x10] sm:$0xff]
    %v743 = vld [vmem:[%s5 + $0x18] sm:$0xff]
    %v744 = vld [vmem:[%s7] sm:$0x1]
    %v746 = vperm.slane %v744, 0
    %756 = vst [vmem:[#allocation1] ss:$4 sm:$0xff] %v732
    %s757 = scalar_lea.vmem [#allocation1], 1
    %758 = vst [vmem:[%s757] ss:$4 sm:$0xff] %v733
    %s759 = scalar_lea.vmem [#allocation1], 2
    %760 = vst [vmem:[%s759] ss:$4 sm:$0xff] %v734
    %s761 = scalar_lea.vmem [#allocation1], 3
    %762 = vst [vmem:[%s761] ss:$4 sm:$0xff] %v735
    %s763 = scalar_lea.vmem [#allocation1], 32
    %764 = vst [vmem:[%s763] ss:$4 sm:$0xff] %v736
    %s765 = scalar_lea.vmem [#allocation1], 33
    %766 = vst [vmem:[%s765] ss:$4 sm:$0xff] %v737
    %s767 = scalar_lea.vmem [#allocation1], 34
    %768 = vst [vmem:[%s767] ss:$4 sm:$0xff] %v738
    %s769 = scalar_lea.vmem [#allocation1], 35
    %770 = vst [vmem:[%s769] ss:$4 sm:$0xff] %v739
    %v771 = vld.sshfl [vmem:[#allocation1] sm:$0xff pattern:$0x73625140]
    %v772 = vld.sshfl [vmem:[#allocation1 + $0x20] sm:$0xff pattern:$0x73625140]
    %v773 = vsel %vm166, %v771, 0
    %v775 = vsel %vm166, %v772, 0
    %777 = vmatpush.msra.mxu0 0.0
    %778 = vmatpush.msra.mxu0 0.0
    %779 = vmatpush.msra.mxu0 0.0
    %780 = vmatpush.msra.mxu0 0.0
    %781 = vmatpush.msra.mxu0 0.0
    %782 = vmatpush.msra.mxu0 0.0
    %783 = vmatpush.msra.mxu0 0.0
    %784 = vmatpush.msra.mxu0 0.0
    %785 = vmatpush.msra.mxu0 0.0
    %786 = vmatpush.msra.mxu0 0.0
    %787 = vmatpush.msra.mxu0 0.0
    %788 = vmatpush.msra.mxu0 0.0
    %789 = vmatpush.msra.mxu0 %v743
    %790 = vmatpush.msra.mxu0 %v742
    %791 = vmatpush.msra.mxu0 %v741
    %792 = vmatpush.msra.mxu0 %v740
    %793 = vmatmul.f32.gmra.mxu0 %v773
    %v794 = vpop.f32.mrf.mxu0
    %v795 = vadd.f32 %v746, %v794
    %796 = vmatmul.f32.gmra.mxu0 %v775
    %v797 = vpop.f32.mrf.mxu0
    %v798 = vadd.f32 %v746, %v797
    %799 = vdwg.mxu0
    %v802 = vrot.slane %v795, 2
    %v803 = vrot.slane %v795, 4
    %v804 = vrot.slane %v795, 6
    %v805 = vrot.slane %v798, 2
    %v806 = vrot.slane %v798, 4
    %v807 = vrot.slane %v798, 6
    %814 = vst.msk [vmem:[#allocation2] sm:$0x3] %vm152, %v795
    %815 = vst.msk [vmem:[#allocation2 + $0x2] sm:$0x3] %vm152, %v802
    %816 = vst.msk [vmem:[#allocation2 + $0x4] sm:$0x3] %vm152, %v803
    %817 = vst.msk [vmem:[#allocation2 + $0x6] sm:$0x3] %vm152, %v804
    %818 = vst.msk [vmem:[#allocation2 + $0x8] sm:$0x3] %vm152, %v798
    %819 = vst.msk [vmem:[#allocation2 + $0xa] sm:$0x3] %vm152, %v805
    %820 = vst.msk [vmem:[#allocation2 + $0xc] sm:$0x3] %vm152, %v806
    %821 = vst.msk [vmem:[#allocation2 + $0xe] sm:$0x3] %vm152, %v807
    %v822 = vld [vmem:[#allocation7] sm:$0xff]
    %v823 = vld [vmem:[#allocation7 + $0x8] sm:$0xff]
    %v824 = vld [vmem:[#allocation7 + $0x10] sm:$0xff]
    %v825 = vld [vmem:[#allocation7 + $0x18] sm:$0xff]
    %v826 = vld [vmem:[%s8] sm:$0x1]
    %827 = vmatpush.msra.mxu0 0.0
    %828 = vmatpush.msra.mxu0 0.0
    %829 = vmatpush.msra.mxu0 0.0
    %830 = vmatpush.msra.mxu0 0.0
    %831 = vmatpush.msra.mxu0 0.0
    %832 = vmatpush.msra.mxu0 0.0
    %833 = vmatpush.msra.mxu0 0.0
    %834 = vmatpush.msra.mxu0 0.0
    %835 = vmatpush.msra.mxu0 0.0
    %836 = vmatpush.msra.mxu0 0.0
    %837 = vmatpush.msra.mxu0 0.0
    %838 = vmatpush.msra.mxu0 0.0
    %839 = vmatpush.msra.mxu0 %v825
    %840 = vmatpush.msra.mxu0 %v824
    %841 = vmatpush.msra.mxu0 %v823
    %842 = vmatpush.msra.mxu0 %v822
    %843 = vmatmul.f32.gmra.mxu0 %v168
    %v844 = vpop.f32.mrf.mxu0
    %v845 = vadd.f32 0.0, %v844
    %846 = vdwg.mxu0
    %v847 = vld [vmem:[#allocation2] sm:$0x3]
    %v848 = vadd.f32 %v847, %v845
    %v849 = vxor.u32 %v848, 2147483648
    %v850 = vmul.f32 %v849, 1.442695
    %v851 = vpow.pop %v850
    %v852 = vadd.f32 %v851, 1.0
    %v853 = vrcp.pop %v852
    %v854 = vmul.f32 %v852, %v853
    %v855 = vsub.f32 1.0, %v854
    %v856 = vmul.f32 %v853, %v855
    %v857 = vadd.f32 %v853, %v856
    %vm858 = vweird.f32 %v852
    %vm859 = vweird.f32 %v853
    %vm860 = vmor %vm858, %vm859
    %v861 = vsel %vm860, %v853, %v857
    %v862 = vand.u32 2147483647, %v852
    %vm863 = vcmp.eq.f32.partialorder %v862, 8.507059e+37
    %v864 = vand.u32 %v852, 2147483648
    %v865 = vor.u32 1.1754944e-38, %v864
    %v866 = vsel %vm863, %v865, %v861
    %v867 = vmul.f32 1.0, %v866
    %v869 = vperm.slane %v826, 0
    %870 = vrot.lane.b32.xlu0 %v869, 64
    %v871 = vpop.permute.xlu0 %870
    %v873 = vadd.f32 %v845, %v871
    %875 = vrot.lane.b32.xlu0 %v873, 64
    %v876 = vpop.permute.xlu0 %875
    %v878 = vmul.f32 %v867, %v876
    %880 = vrot.lane.b32.xlu0 %v878, 64
    %v881 = vpop.permute.xlu0 %880
    %v883 = vadd.f32 %v847, %v881
    %v884 = vtanh.pop %v883
    %v885 = vsub.f32 1.0, %v867
    %887 = vrot.lane.b32.xlu0 %v884, 96
    %v888 = vpop.permute.xlu0 %887
    %v890 = vmul.f32 %v885, %v888
    %v891 = vmul.f32 %v867, 0.0
    %v892 = vadd.f32 %v890, %v891
    %894 = vrot.lane.b32.xlu0 %v892, 96
    %v895 = vpop.permute.xlu0 %894
    %v896 = vsel %vm166, %v895, 0
    %898 = vmatpush.msra.mxu0 0.0
    %899 = vmatpush.msra.mxu0 0.0
    %900 = vmatpush.msra.mxu0 0.0
    %901 = vmatpush.msra.mxu0 0.0
    %902 = vmatpush.msra.mxu0 0.0
    %903 = vmatpush.msra.mxu0 0.0
    %904 = vmatpush.msra.mxu0 0.0
    %905 = vmatpush.msra.mxu0 0.0
    %906 = vmatpush.msra.mxu0 0.0
    %907 = vmatpush.msra.mxu0 0.0
    %908 = vmatpush.msra.mxu0 0.0
    %909 = vmatpush.msra.mxu0 0.0
    %910 = vmatpush.msra.mxu0 %v825
    %911 = vmatpush.msra.mxu0 %v824
    %912 = vmatpush.msra.mxu0 %v823
    %913 = vmatpush.msra.mxu0 %v822
    %914 = vmatmul.f32.gmra.mxu0 %v896
    %v915 = vpop.f32.mrf.mxu0
    %v916 = vadd.f32 0.0, %v915
    %917 = vdwg.mxu0
    %v918 = vld [vmem:[%s264] sm:$0x3]
    %v919 = vadd.f32 %v918, %v916
    %v920 = vxor.u32 %v919, 2147483648
    %v921 = vmul.f32 %v920, 1.442695
    %v922 = vpow.pop %v921
    %v923 = vadd.f32 %v922, 1.0
    %v924 = vrcp.pop %v923
    %v925 = vmul.f32 %v923, %v924
    %v926 = vsub.f32 1.0, %v925
    %v927 = vmul.f32 %v924, %v926
    %v928 = vadd.f32 %v924, %v927
    %vm929 = vweird.f32 %v923
    %vm930 = vweird.f32 %v924
    %vm931 = vmor %vm929, %vm930
    %v932 = vsel %vm931, %v924, %v928
    %v933 = vand.u32 2147483647, %v923
    %vm934 = vcmp.eq.f32.partialorder %v933, 8.507059e+37
    %v935 = vand.u32 %v923, 2147483648
    %v936 = vor.u32 1.1754944e-38, %v935
    %v937 = vsel %vm934, %v936, %v932
    %v938 = vmul.f32 1.0, %v937
    %v939 = vadd.f32 %v916, %v871
    %941 = vrot.lane.b32.xlu0 %v939, 64
    %v942 = vpop.permute.xlu0 %941
    %v944 = vmul.f32 %v938, %v942
    %946 = vrot.lane.b32.xlu0 %v944, 64
    %v947 = vpop.permute.xlu0 %946
    %v949 = vadd.f32 %v918, %v947
    %v950 = vtanh.pop %v949
    %v951 = vsub.f32 1.0, %v938
    %953 = vrot.lane.b32.xlu0 %v950, 96
    %v954 = vpop.permute.xlu0 %953
    %v956 = vmul.f32 %v951, %v954
    %v957 = vmul.f32 %v938, %v892
    %v958 = vadd.f32 %v956, %v957
    %960 = vrot.lane.b32.xlu0 %v958, 96
    %v961 = vpop.permute.xlu0 %960
    %v962 = vsel %vm166, %v961, 0
    %964 = vmatpush.msra.mxu0 0.0
    %965 = vmatpush.msra.mxu0 0.0
    %966 = vmatpush.msra.mxu0 0.0
    %967 = vmatpush.msra.mxu0 0.0
    %968 = vmatpush.msra.mxu0 0.0
    %969 = vmatpush.msra.mxu0 0.0
    %970 = vmatpush.msra.mxu0 0.0
    %971 = vmatpush.msra.mxu0 0.0
    %972 = vmatpush.msra.mxu0 0.0
    %973 = vmatpush.msra.mxu0 0.0
    %974 = vmatpush.msra.mxu0 0.0
    %975 = vmatpush.msra.mxu0 0.0
    %976 = vmatpush.msra.mxu0 %v825
    %977 = vmatpush.msra.mxu0 %v824
    %978 = vmatpush.msra.mxu0 %v823
    %979 = vmatpush.msra.mxu0 %v822
    %980 = vmatmul.f32.gmra.mxu0 %v962
    %v981 = vpop.f32.mrf.mxu0
    %v982 = vadd.f32 0.0, %v981
    %983 = vdwg.mxu0
    %v984 = vld [vmem:[%s334] sm:$0x3]
    %v985 = vadd.f32 %v984, %v982
    %v986 = vxor.u32 %v985, 2147483648
    %v987 = vmul.f32 %v986, 1.442695
    %v988 = vpow.pop %v987
    %v989 = vadd.f32 %v988, 1.0
    %v990 = vrcp.pop %v989
    %v991 = vmul.f32 %v989, %v990
    %v992 = vsub.f32 1.0, %v991
    %v993 = vmul.f32 %v990, %v992
    %v994 = vadd.f32 %v990, %v993
    %vm995 = vweird.f32 %v989
    %vm996 = vweird.f32 %v990
    %vm997 = vmor %vm995, %vm996
    %v998 = vsel %vm997, %v990, %v994
    %v999 = vand.u32 2147483647, %v989
    %vm1000 = vcmp.eq.f32.partialorder %v999, 8.507059e+37
    %v1001 = vand.u32 %v989, 2147483648
    %v1002 = vor.u32 1.1754944e-38, %v1001
    %v1003 = vsel %vm1000, %v1002, %v998
    %v1004 = vmul.f32 1.0, %v1003
    %v1005 = vadd.f32 %v982, %v871
    %1007 = vrot.lane.b32.xlu0 %v1005, 64
    %v1008 = vpop.permute.xlu0 %1007
    %v1010 = vmul.f32 %v1004, %v1008
    %1012 = vrot.lane.b32.xlu0 %v1010, 64
    %v1013 = vpop.permute.xlu0 %1012
    %v1015 = vadd.f32 %v984, %v1013
    %v1016 = vtanh.pop %v1015
    %v1017 = vsub.f32 1.0, %v1004
    %1019 = vrot.lane.b32.xlu0 %v1016, 96
    %v1020 = vpop.permute.xlu0 %1019
    %v1022 = vmul.f32 %v1017, %v1020
    %v1023 = vmul.f32 %v1004, %v958
    %v1024 = vadd.f32 %v1022, %v1023
    %1026 = vrot.lane.b32.xlu0 %v1024, 96
    %v1027 = vpop.permute.xlu0 %1026
    %v1028 = vsel %vm166, %v1027, 0
    %1030 = vmatpush.msra.mxu0 0.0
    %1031 = vmatpush.msra.mxu0 0.0
    %1032 = vmatpush.msra.mxu0 0.0
    %1033 = vmatpush.msra.mxu0 0.0
    %1034 = vmatpush.msra.mxu0 0.0
    %1035 = vmatpush.msra.mxu0 0.0
    %1036 = vmatpush.msra.mxu0 0.0
    %1037 = vmatpush.msra.mxu0 0.0
    %1038 = vmatpush.msra.mxu0 0.0
    %1039 = vmatpush.msra.mxu0 0.0
    %1040 = vmatpush.msra.mxu0 0.0
    %1041 = vmatpush.msra.mxu0 0.0
    %1042 = vmatpush.msra.mxu0 %v825
    %1043 = vmatpush.msra.mxu0 %v824
    %1044 = vmatpush.msra.mxu0 %v823
    %1045 = vmatpush.msra.mxu0 %v822
    %1046 = vmatmul.f32.gmra.mxu0 %v1028
    %v1047 = vpop.f32.mrf.mxu0
    %v1048 = vadd.f32 0.0, %v1047
    %1049 = vdwg.mxu0
    %v1050 = vld [vmem:[%s404] sm:$0x3]
    %v1051 = vadd.f32 %v1050, %v1048
    %v1052 = vxor.u32 %v1051, 2147483648
    %v1053 = vmul.f32 %v1052, 1.442695
    %v1054 = vpow.pop %v1053
    %v1055 = vadd.f32 %v1054, 1.0
    %v1056 = vrcp.pop %v1055
    %v1057 = vmul.f32 %v1055, %v1056
    %v1058 = vsub.f32 1.0, %v1057
    %v1059 = vmul.f32 %v1056, %v1058
    %v1060 = vadd.f32 %v1056, %v1059
    %vm1061 = vweird.f32 %v1055
    %vm1062 = vweird.f32 %v1056
    %vm1063 = vmor %vm1061, %vm1062
    %v1064 = vsel %vm1063, %v1056, %v1060
    %v1065 = vand.u32 2147483647, %v1055
    %vm1066 = vcmp.eq.f32.partialorder %v1065, 8.507059e+37
    %v1067 = vand.u32 %v1055, 2147483648
    %v1068 = vor.u32 1.1754944e-38, %v1067
    %v1069 = vsel %vm1066, %v1068, %v1064
    %v1070 = vmul.f32 1.0, %v1069
    %v1071 = vadd.f32 %v1048, %v871
    %1073 = vrot.lane.b32.xlu0 %v1071, 64
    %v1074 = vpop.permute.xlu0 %1073
    %v1076 = vmul.f32 %v1070, %v1074
    %1078 = vrot.lane.b32.xlu0 %v1076, 64
    %v1079 = vpop.permute.xlu0 %1078
    %v1081 = vadd.f32 %v1050, %v1079
    %v1082 = vtanh.pop %v1081
    %v1083 = vsub.f32 1.0, %v1070
    %1085 = vrot.lane.b32.xlu0 %v1082, 96
    %v1086 = vpop.permute.xlu0 %1085
    %v1088 = vmul.f32 %v1083, %v1086
    %v1089 = vmul.f32 %v1070, %v1024
    %v1090 = vadd.f32 %v1088, %v1089
    %1092 = vrot.lane.b32.xlu0 %v1090, 96
    %v1093 = vpop.permute.xlu0 %1092
    %v1094 = vsel %vm166, %v1093, 0
    %1096 = vmatpush.msra.mxu0 0.0
    %1097 = vmatpush.msra.mxu0 0.0
    %1098 = vmatpush.msra.mxu0 0.0
    %1099 = vmatpush.msra.mxu0 0.0
    %1100 = vmatpush.msra.mxu0 0.0
    %1101 = vmatpush.msra.mxu0 0.0
    %1102 = vmatpush.msra.mxu0 0.0
    %1103 = vmatpush.msra.mxu0 0.0
    %1104 = vmatpush.msra.mxu0 0.0
    %1105 = vmatpush.msra.mxu0 0.0
    %1106 = vmatpush.msra.mxu0 0.0
    %1107 = vmatpush.msra.mxu0 0.0
    %1108 = vmatpush.msra.mxu0 %v825
    %1109 = vmatpush.msra.mxu0 %v824
    %1110 = vmatpush.msra.mxu0 %v823
    %1111 = vmatpush.msra.mxu0 %v822
    %1112 = vmatmul.f32.gmra.mxu0 %v1094
    %v1113 = vpop.f32.mrf.mxu0
    %v1114 = vadd.f32 0.0, %v1113
    %1115 = vdwg.mxu0
    %v1116 = vld [vmem:[%s474] sm:$0x3]
    %v1117 = vadd.f32 %v1116, %v1114
    %v1118 = vxor.u32 %v1117, 2147483648
    %v1119 = vmul.f32 %v1118, 1.442695
    %v1120 = vpow.pop %v1119
    %v1121 = vadd.f32 %v1120, 1.0
    %v1122 = vrcp.pop %v1121
    %v1123 = vmul.f32 %v1121, %v1122
    %v1124 = vsub.f32 1.0, %v1123
    %v1125 = vmul.f32 %v1122, %v1124
    %v1126 = vadd.f32 %v1122, %v1125
    %vm1127 = vweird.f32 %v1121
    %vm1128 = vweird.f32 %v1122
    %vm1129 = vmor %vm1127, %vm1128
    %v1130 = vsel %vm1129, %v1122, %v1126
    %v1131 = vand.u32 2147483647, %v1121
    %vm1132 = vcmp.eq.f32.partialorder %v1131, 8.507059e+37
    %v1133 = vand.u32 %v1121, 2147483648
    %v1134 = vor.u32 1.1754944e-38, %v1133
    %v1135 = vsel %vm1132, %v1134, %v1130
    %v1136 = vmul.f32 1.0, %v1135
    %v1137 = vadd.f32 %v1114, %v871
    %1139 = vrot.lane.b32.xlu0 %v1137, 64
    %v1140 = vpop.permute.xlu0 %1139
    %v1142 = vmul.f32 %v1136, %v1140
    %1144 = vrot.lane.b32.xlu0 %v1142, 64
    %v1145 = vpop.permute.xlu0 %1144
    %v1147 = vadd.f32 %v1116, %v1145
    %v1148 = vtanh.pop %v1147
    %v1149 = vsub.f32 1.0, %v1136
    %1151 = vrot.lane.b32.xlu0 %v1148, 96
    %v1152 = vpop.permute.xlu0 %1151
    %v1154 = vmul.f32 %v1149, %v1152
    %v1155 = vmul.f32 %v1136, %v1090
    %v1156 = vadd.f32 %v1154, %v1155
    %1158 = vrot.lane.b32.xlu0 %v1156, 96
    %v1159 = vpop.permute.xlu0 %1158
    %v1160 = vsel %vm166, %v1159, 0
    %1162 = vmatpush.msra.mxu0 0.0
    %1163 = vmatpush.msra.mxu0 0.0
    %1164 = vmatpush.msra.mxu0 0.0
    %1165 = vmatpush.msra.mxu0 0.0
    %1166 = vmatpush.msra.mxu0 0.0
    %1167 = vmatpush.msra.mxu0 0.0
    %1168 = vmatpush.msra.mxu0 0.0
    %1169 = vmatpush.msra.mxu0 0.0
    %1170 = vmatpush.msra.mxu0 0.0
    %1171 = vmatpush.msra.mxu0 0.0
    %1172 = vmatpush.msra.mxu0 0.0
    %1173 = vmatpush.msra.mxu0 0.0
    %1174 = vmatpush.msra.mxu0 %v825
    %1175 = vmatpush.msra.mxu0 %v824
    %1176 = vmatpush.msra.mxu0 %v823
    %1177 = vmatpush.msra.mxu0 %v822
    %1178 = vmatmul.f32.gmra.mxu0 %v1160
    %v1179 = vpop.f32.mrf.mxu0
    %v1180 = vadd.f32 0.0, %v1179
    %1181 = vdwg.mxu0
    %v1182 = vld [vmem:[%s544] sm:$0x3]
    %v1183 = vadd.f32 %v1182, %v1180
    %v1184 = vxor.u32 %v1183, 2147483648
    %v1185 = vmul.f32 %v1184, 1.442695
    %v1186 = vpow.pop %v1185
    %v1187 = vadd.f32 %v1186, 1.0
    %v1188 = vrcp.pop %v1187
    %v1189 = vmul.f32 %v1187, %v1188
    %v1190 = vsub.f32 1.0, %v1189
    %v1191 = vmul.f32 %v1188, %v1190
    %v1192 = vadd.f32 %v1188, %v1191
    %vm1193 = vweird.f32 %v1187
    %vm1194 = vweird.f32 %v1188
    %vm1195 = vmor %vm1193, %vm1194
    %v1196 = vsel %vm1195, %v1188, %v1192
    %v1197 = vand.u32 2147483647, %v1187
    %vm1198 = vcmp.eq.f32.partialorder %v1197, 8.507059e+37
    %v1199 = vand.u32 %v1187, 2147483648
    %v1200 = vor.u32 1.1754944e-38, %v1199
    %v1201 = vsel %vm1198, %v1200, %v1196
    %v1202 = vmul.f32 1.0, %v1201
    %v1203 = vadd.f32 %v1180, %v871
    %1205 = vrot.lane.b32.xlu0 %v1203, 64
    %v1206 = vpop.permute.xlu0 %1205
    %v1208 = vmul.f32 %v1202, %v1206
    %1210 = vrot.lane.b32.xlu0 %v1208, 64
    %v1211 = vpop.permute.xlu0 %1210
    %v1213 = vadd.f32 %v1182, %v1211
    %v1214 = vtanh.pop %v1213
    %v1215 = vsub.f32 1.0, %v1202
    %1217 = vrot.lane.b32.xlu0 %v1214, 96
    %v1218 = vpop.permute.xlu0 %1217
    %v1220 = vmul.f32 %v1215, %v1218
    %v1221 = vmul.f32 %v1202, %v1156
    %v1222 = vadd.f32 %v1220, %v1221
    %1224 = vrot.lane.b32.xlu0 %v1222, 96
    %v1225 = vpop.permute.xlu0 %1224
    %v1226 = vsel %vm166, %v1225, 0
    %1228 = vmatpush.msra.mxu0 0.0
    %1229 = vmatpush.msra.mxu0 0.0
    %1230 = vmatpush.msra.mxu0 0.0
    %1231 = vmatpush.msra.mxu0 0.0
    %1232 = vmatpush.msra.mxu0 0.0
    %1233 = vmatpush.msra.mxu0 0.0
    %1234 = vmatpush.msra.mxu0 0.0
    %1235 = vmatpush.msra.mxu0 0.0
    %1236 = vmatpush.msra.mxu0 0.0
    %1237 = vmatpush.msra.mxu0 0.0
    %1238 = vmatpush.msra.mxu0 0.0
    %1239 = vmatpush.msra.mxu0 0.0
    %1240 = vmatpush.msra.mxu0 %v825
    %1241 = vmatpush.msra.mxu0 %v824
    %1242 = vmatpush.msra.mxu0 %v823
    %1243 = vmatpush.msra.mxu0 %v822
    %1244 = vmatmul.f32.gmra.mxu0 %v1226
    %v1245 = vpop.f32.mrf.mxu0
    %v1246 = vadd.f32 0.0, %v1245
    %1247 = vdwg.mxu0
    %v1248 = vld [vmem:[%s614] sm:$0x3]
    %v1249 = vadd.f32 %v1248, %v1246
    %v1250 = vxor.u32 %v1249, 2147483648
    %v1251 = vmul.f32 %v1250, 1.442695
    %v1252 = vpow.pop %v1251
    %v1253 = vadd.f32 %v1252, 1.0
    %v1254 = vrcp.pop %v1253
    %v1255 = vmul.f32 %v1253, %v1254
    %v1256 = vsub.f32 1.0, %v1255
    %v1257 = vmul.f32 %v1254, %v1256
    %v1258 = vadd.f32 %v1254, %v1257
    %vm1259 = vweird.f32 %v1253
    %vm1260 = vweird.f32 %v1254
    %vm1261 = vmor %vm1259, %vm1260
    %v1262 = vsel %vm1261, %v1254, %v1258
    %v1263 = vand.u32 2147483647, %v1253
    %vm1264 = vcmp.eq.f32.partialorder %v1263, 8.507059e+37
    %v1265 = vand.u32 %v1253, 2147483648
    %v1266 = vor.u32 1.1754944e-38, %v1265
    %v1267 = vsel %vm1264, %v1266, %v1262
    %v1268 = vmul.f32 1.0, %v1267
    %v1269 = vadd.f32 %v1246, %v871
    %1271 = vrot.lane.b32.xlu0 %v1269, 64
    %v1272 = vpop.permute.xlu0 %1271
    %v1274 = vmul.f32 %v1268, %v1272
    %1276 = vrot.lane.b32.xlu0 %v1274, 64
    %v1277 = vpop.permute.xlu0 %1276
    %v1279 = vadd.f32 %v1248, %v1277
    %v1280 = vtanh.pop %v1279
    %v1281 = vsub.f32 1.0, %v1268
    %1283 = vrot.lane.b32.xlu0 %v1280, 96
    %v1284 = vpop.permute.xlu0 %1283
    %v1286 = vmul.f32 %v1281, %v1284
    %v1287 = vmul.f32 %v1268, %v1222
    %v1288 = vadd.f32 %v1286, %v1287
    %1290 = vrot.lane.b32.xlu0 %v1288, 96
    %v1291 = vpop.permute.xlu0 %1290
    %v1292 = vsel %vm166, %v1291, 0
    %1294 = vmatpush.msra.mxu0 0.0
    %1295 = vmatpush.msra.mxu0 0.0
    %1296 = vmatpush.msra.mxu0 0.0
    %1297 = vmatpush.msra.mxu0 0.0
    %1298 = vmatpush.msra.mxu0 0.0
    %1299 = vmatpush.msra.mxu0 0.0
    %1300 = vmatpush.msra.mxu0 0.0
    %1301 = vmatpush.msra.mxu0 0.0
    %1302 = vmatpush.msra.mxu0 0.0
    %1303 = vmatpush.msra.mxu0 0.0
    %1304 = vmatpush.msra.mxu0 0.0
    %1305 = vmatpush.msra.mxu0 0.0
    %1306 = vmatpush.msra.mxu0 %v825
    %1307 = vmatpush.msra.mxu0 %v824
    %1308 = vmatpush.msra.mxu0 %v823
    %1309 = vmatpush.msra.mxu0 %v822
    %1310 = vmatmul.f32.gmra.mxu0 %v1292
    %v1311 = vpop.f32.mrf.mxu0
    %v1312 = vadd.f32 0.0, %v1311
    %1313 = vdwg.mxu0
    %v1314 = vld [vmem:[%s684] sm:$0x3]
    %v1315 = vadd.f32 %v1314, %v1312
    %v1316 = vxor.u32 %v1315, 2147483648
    %v1317 = vmul.f32 %v1316, 1.442695
    %v1318 = vpow.pop %v1317
    %v1319 = vadd.f32 %v1318, 1.0
    %v1320 = vrcp.pop %v1319
    %v1321 = vmul.f32 %v1319, %v1320
    %v1322 = vsub.f32 1.0, %v1321
    %v1323 = vmul.f32 %v1320, %v1322
    %v1324 = vadd.f32 %v1320, %v1323
    %vm1325 = vweird.f32 %v1319
    %vm1326 = vweird.f32 %v1320
    %vm1327 = vmor %vm1325, %vm1326
    %v1328 = vsel %vm1327, %v1320, %v1324
    %v1329 = vand.u32 2147483647, %v1319
    %vm1330 = vcmp.eq.f32.partialorder %v1329, 8.507059e+37
    %v1331 = vand.u32 %v1319, 2147483648
    %v1332 = vor.u32 1.1754944e-38, %v1331
    %v1333 = vsel %vm1330, %v1332, %v1328
    %v1334 = vmul.f32 1.0, %v1333
    %v1335 = vadd.f32 %v1312, %v871
    %1337 = vrot.lane.b32.xlu0 %v1335, 64
    %v1338 = vpop.permute.xlu0 %1337
    %v1340 = vmul.f32 %v1334, %v1338
    %1342 = vrot.lane.b32.xlu0 %v1340, 64
    %v1343 = vpop.permute.xlu0 %1342
    %v1345 = vadd.f32 %v1314, %v1343
    %v1346 = vtanh.pop %v1345
    %v1347 = vsub.f32 1.0, %v1334
    %1349 = vrot.lane.b32.xlu0 %v1346, 96
    %v1350 = vpop.permute.xlu0 %1349
    %v1352 = vmul.f32 %v1347, %v1350
    %v1353 = vmul.f32 %v1334, %v1288
    %v1354 = vadd.f32 %v1352, %v1353
    %v1355 = vld [vmem:[%s9] sm:$0xff]
    %v1356 = vld [vmem:[%s9 + $0x8] sm:$0xff]
    %v1357 = vld [vmem:[%s9 + $0x10] sm:$0xff]
    %v1358 = vld [vmem:[%s9 + $0x18] sm:$0xff]
    %v1359 = vld [vmem:[%s10] sm:$0x1]
    %v1361 = vperm.slane %v1359, 0
    %1364 = vrot.lane.b32.xlu0 %v1354, 96
    %v1365 = vpop.permute.xlu0 %1364
    %v1366 = vsel %vm166, %v1365, 0
    %1368 = vmatpush.msra.mxu0 0.0
    %1369 = vmatpush.msra.mxu0 0.0
    %1370 = vmatpush.msra.mxu0 0.0
    %1371 = vmatpush.msra.mxu0 0.0
    %1372 = vmatpush.msra.mxu0 0.0
    %1373 = vmatpush.msra.mxu0 0.0
    %1374 = vmatpush.msra.mxu0 0.0
    %1375 = vmatpush.msra.mxu0 0.0
    %1376 = vmatpush.msra.mxu0 0.0
    %1377 = vmatpush.msra.mxu0 0.0
    %1378 = vmatpush.msra.mxu0 0.0
    %1379 = vmatpush.msra.mxu0 0.0
    %1380 = vmatpush.msra.mxu0 %v1358
    %1381 = vmatpush.msra.mxu0 %v1357
    %1382 = vmatpush.msra.mxu0 %v1356
    %1383 = vmatpush.msra.mxu0 %v1355
    %1384 = vmatmul.f32.gmra.mxu0 %v1366
    %v1385 = vpop.f32.mrf.mxu0
    %v1386 = vadd.f32 %v1361, %v1385
    %1387 = vdwg.mxu0
    %vm1388 = vcmask 25600
    %1389 = vst.msk [vmem:[#allocation9] sm:$0x3] %vm1388, %v1386
    // Predicated region
    $region54: #{gru_forward.1} parent=1 // pred_check
      _
    $region55: #{gru_forward.1} parent=1 // pred_check_branch
      %1391 = sbr.rel (0) target = $region57
    $region56: #{gru_forward.1} parent=1 // pred_region
      %1393 = vsyncadd [#allocation6], 0
      %s1395 = sshll.u32 [#allocation9], 4
      %s1396 = int_to_ptr.vmem [resolvable:$true] %s1395
      %s1397 = sshll.u32 %s11, 4
      %s1398 = int_to_ptr.hbm [resolvable:$true] %s1397
      %1400 = dma.vmem_to_hbm [thread:$0]  %s1396, 32, %s1398, [#allocation6]
    $region57: #{gru_forward.1} parent=1 // pred_fallthru
      _
    // Predicated region
    $region58: #{gru_forward.1} parent=1 // pred_check
      _
    $region59: #{gru_forward.1} parent=1 // pred_check_branch
      %1402 = sbr.rel (0) target = $region61
    $region60: #{gru_forward.1} parent=1 // pred_region
      %1404 = dma.done [#allocation6], 32
    $region61: #{gru_forward.1} parent=1 // pred_fallthru
      _
    %1405 = vsyncpa [#allocation5], 1
    %1406 = vsyncpa [#allocation8], 1
    %1407 = vsyncpa [#allocation6], 1

</llo_original>
